<compile_context>
chip_gen: v6e
topology: v6e:2x2x1
jax: 0.10.0
libtpu: 0.0.40
codegen_flags: <defaults>
</compile_context>

<pallas_src>
import functools

import jax
import jax.numpy as jnp
import numpy as np
from jax import lax
from jax.experimental import pallas as pl
from jax.experimental.pallas import tpu as pltpu

# ---------------- configuration (mirrors SplAtConv2d __init__ defaults) ----------------
IN_CHANNELS = 4
CHANNELS = 4
KERNEL_SIZE = (3, 3)
STRIDE = (1, 1)
PADDING = (1, 1)
GROUPS = 1                 # cardinality
RADIX = 2
REDUCTION = 4
INTER = max(CHANNELS * RADIX // REDUCTION, 32)   # inter_channels = 32
CRAD = CHANNELS * RADIX                          # channels * radix = 8


def _round_up(x, m):
    return ((x + m - 1) // m) * m


# ----------------------------- Pallas kernel -----------------------------
def splat_kernel(x_ref, mask_ref, wc_ref, bc_ref, w1_ref, b1_ref, w2_ref, b2_ref,
                 out_ref, slab_ref, *, radix, cardinality, channels, batch, cin,
                 wp, nw, taps):
    # x_ref   : (B*Cin, NW)      flattened padded images, row = b*Cin + c
    # mask_ref: (B*NW, B)        block-diagonal GAP mask, pre-scaled by 1/(Hout*Wout)
    # out_ref : (B*C, NW)        lane-dense output; wrapper drops invalid wide columns
    # slab_ref: (TP*Cin, B*NW)   VMEM scratch for the fused-conv LHS^T slab
    C = channels
    cpc = C // cardinality
    n_taps = len(taps)
    n_pair = (n_taps + 1) // 2
    rows_per_pair = 2 * cin            # == 8 for the default config -> full-sublane stores

    # ---- build conv slab: 1 aligned base load, static lane rolls, full-tile stores ----
    xall = x_ref[...]                                      # (B*Cin, NW), one aligned load

    def tap_val(t):
        if t >= n_taps:                                    # zero pad tap (weight cols are 0)
            return jnp.zeros_like(xall)
        kh, kw = taps[t]
        s = kh * wp + kw
        if s == 0:
            return xall
        # shifted[:, j] = xall[:, j + s] for all valid j; wrap lanes land past the
        # last valid output column (masked in GAP, dropped by the wrapper slice).
        return pltpu.roll(xall, nw - s, 1)                 # == jnp.roll(xall, -s, axis=1)

    for p in range(n_pair):
        t0 = tap_val(2 * p)
        t1 = tap_val(2 * p + 1)
        for b in range(batch):
            blk = jnp.concatenate(
                [t0[b * cin:(b + 1) * cin, :], t1[b * cin:(b + 1) * cin, :]], axis=0)
            slab_ref[p * rows_per_pair:(p + 1) * rows_per_pair,
                     b * nw:(b + 1) * nw] = blk            # full (8, NW) aligned store

    # ---- grouped KxK conv for the whole batch as ONE fused matmul + bias + ReLU ----
    y = jnp.dot(wc_ref[...], slab_ref[...],
                preferred_element_type=jnp.float32)        # (CRAD, B*NW), lane-dense
    y = jnp.maximum(y + bc_ref[...], 0.0)

    # ---- sum over radix splits + masked global average pool as an MXU matvec ----
    g = y[0:C, :]
    for r in range(1, radix):
        g = g + y[r * C:(r + 1) * C, :]
    gap = jnp.dot(g, mask_ref[...], preferred_element_type=jnp.float32)   # (C, B)

    # ---- fc1 (grouped 1x1, block-diag dense) + ReLU, batched over columns ----
    h = jnp.dot(w1_ref[...], gap, preferred_element_type=jnp.float32) + b1_ref[...]
    h = jnp.maximum(h, 0.0)                                # (INTER, B)

    # ---- fc2 (grouped 1x1, block-diag dense) ----
    a = jnp.dot(w2_ref[...], h, preferred_element_type=jnp.float32) + b2_ref[...]   # (CRAD, B)

    # ---- rSoftMax: channel layout (cardinality, radix, cpc); softmax over radix ----
    if radix > 1:
        logits = []
        for r in range(radix):
            parts = [a[(k * radix + r) * cpc:(k * radix + r + 1) * cpc, :]
                     for k in range(cardinality)]
            logits.append(parts[0] if cardinality == 1
                          else jnp.concatenate(parts, axis=0))   # (C, B)
        m = logits[0]
        for lg in logits[1:]:
            m = jnp.maximum(m, lg)
        exps = [jnp.exp(lg - m) for lg in logits]
        denom = exps[0]
        for e in exps[1:]:
            denom = denom + e
        inv = pl.reciprocal(denom, approx=True)                  # one EUP reciprocal
        attns = [e * inv for e in exps]                          # each (C, B)
    else:
        attns = [jax.nn.sigmoid(a)]

    # ---- attention-weighted recombination, ONE full (B*C, NW) store ----
    segs = []
    for b in range(batch):
        seg = attns[0][:, b:b + 1] * y[0:C, b * nw:(b + 1) * nw]
        for r in range(1, radix):
            seg = seg + attns[r][:, b:b + 1] * y[r * C:(r + 1) * C, b * nw:(b + 1) * nw]
        segs.append(seg)
    out = segs[0] if batch == 1 else jnp.concatenate(segs, axis=0)   # (B*C, NW)
    out_ref[...] = out.astype(out_ref.dtype)


# ----------------------------- wrapper -----------------------------
def splat_conv2d(x_nchw, params):
    B, Cin, H, W = x_nchw.shape
    KH, KW = KERNEL_SIZE
    ph, pw = PADDING
    assert STRIDE == (1, 1), "wide-lane conv trick assumes stride (1, 1)"
    assert 2 * Cin == 8, "tap pairing assumes Cin == 4 (2 taps x Cin = 8 sublanes)"
    Hp, Wp = H + 2 * ph, W + 2 * pw
    Hout, Wout = Hp - KH + 1, Wp - KW + 1
    T = KH * KW
    TP = T + (T % 2)                    # taps padded to an even count for paired stores

    # per-image wide (lane) axis: flattened padded image rounded up to 128 lanes.
    # NW >= Hp*Wp guarantees every tap shift reads inside the image's own lanes and
    # that roll wrap-around only touches columns past the last valid output column.
    NW = _round_up(Hp * Wp, 128)
    max_shift = (KH - 1) * Wp + (KW - 1)
    assert NW - max_shift >= (Hout - 1) * Wp + Wout, "roll wrap would hit valid columns"

    # glue: spatial pad, flatten H*W onto lanes.  (B*Cin, NW) -> full 8-sublane DMA tile.
    x_pad = jnp.pad(x_nchw, ((0, 0), (0, 0), (ph, ph), (pw, pw)))
    x_in = x_pad.reshape(B * Cin, Hp * Wp)
    x_in = jnp.pad(x_in, ((0, 0), (0, NW - Hp * Wp)))

    # per-image GAP mask as a block-diagonal (B*NW, B) matrix, pre-scaled by
    # 1/(Hout*Wout), so the pool is a single MXU matvec in the kernel.
    widx = np.arange(NW)
    valid = ((widx % Wp) < Wout) & ((widx // Wp) < Hout)
    mcol = valid.astype(np.float32) / float(Hout * Wout)
    mask_np = np.zeros((B * NW, B), np.float32)
    for b in range(B):
        mask_np[b * NW:(b + 1) * NW, b] = mcol
    maskmat = jnp.asarray(mask_np)

    wconvT, bconv, w1, b1, w2, b2 = params
    assert wconvT.shape == (CRAD, TP * Cin)
    taps = tuple((kh, kw) for kh in range(KH) for kw in range(KW))

    kern = functools.partial(
        splat_kernel, radix=RADIX, cardinality=GROUPS, channels=CHANNELS,
        batch=B, cin=Cin, wp=Wp, nw=NW, taps=taps)

    out_flat = pl.pallas_call(
        kern,
        out_shape=jax.ShapeDtypeStruct((B * CHANNELS, NW), x_nchw.dtype),
        grid_spec=pltpu.PrefetchScalarGridSpec(
            num_scalar_prefetch=0,
            grid=(1,),
            in_specs=[
                pl.BlockSpec((B * Cin, NW), lambda i: (0, 0)),
                pl.BlockSpec((B * NW, B), lambda i: (0, 0)),
                pl.BlockSpec((CRAD, TP * Cin), lambda i: (0, 0)),
                pl.BlockSpec((CRAD, 1), lambda i: (0, 0)),
                pl.BlockSpec((INTER, CHANNELS), lambda i: (0, 0)),
                pl.BlockSpec((INTER, 1), lambda i: (0, 0)),
                pl.BlockSpec((CRAD, INTER), lambda i: (0, 0)),
                pl.BlockSpec((CRAD, 1), lambda i: (0, 0)),
            ],
            out_specs=pl.BlockSpec((B * CHANNELS, NW), lambda i: (0, 0)),
            scratch_shapes=[pltpu.VMEM((TP * Cin, B * NW), jnp.float32)],
        ),
        compiler_params=pltpu.CompilerParams(dimension_semantics=("arbitrary",)),
    )(x_in, maskmat, wconvT, bconv, w1, b1, w2, b2)

    # (B*C, NW) is already (batch, channel)-major: drop invalid wide columns -> NCHW
    out = out_flat.reshape(B, CHANNELS, NW)[:, :, :Hout * Wp]
    out = out.reshape(B, CHANNELS, Hout, Wp)[:, :, :, :Wout]
    return out


# --------------------- grouped-weight densification (glue) ---------------------
def grouped_conv_to_dense(w, groups):
    # w: (Cout, Cin_pg, KH, KW) -> dense (KH*KW, Cin, Cout), zeros off-group
    Cout, Cin_pg, KH, KW = w.shape
    Cin = Cin_pg * groups
    Cout_pg = Cout // groups
    dense = jnp.zeros((KH * KW, Cin, Cout), w.dtype)
    for g in range(groups):
        blk = w[g * Cout_pg:(g + 1) * Cout_pg]              # (Cout_pg, Cin_pg, KH, KW)
        blk = jnp.transpose(blk, (2, 3, 1, 0)).reshape(KH * KW, Cin_pg, Cout_pg)
        dense = dense.at[:, g * Cin_pg:(g + 1) * Cin_pg,
                         g * Cout_pg:(g + 1) * Cout_pg].set(blk)
    return dense


def grouped_1x1_to_dense(w, groups):
    # w: (Cout, Cin_pg, 1, 1) -> dense (Cin, Cout), zeros off-group
    Cout, Cin_pg = w.shape[0], w.shape[1]
    Cin = Cin_pg * groups
    Cout_pg = Cout // groups
    dense = jnp.zeros((Cin, Cout), w.dtype)
    for g in range(groups):
        blk = w[g * Cout_pg:(g + 1) * Cout_pg, :, 0, 0]     # (Cout_pg, Cin_pg)
        dense = dense.at[g * Cin_pg:(g + 1) * Cin_pg,
                         g * Cout_pg:(g + 1) * Cout_pg].set(blk.T)
    return dense


# ----------------------------- pure-JAX reference -----------------------------
def reference(x, w_conv, b_conv, w_fc1, b_fc1, w_fc2, b_fc2):
    dn = ('NCHW', 'OIHW', 'NCHW')
    pad = [(PADDING[0], PADDING[0]), (PADDING[1], PADDING[1])]
    y = lax.conv_general_dilated(x, w_conv, STRIDE, pad, dimension_numbers=dn,
                                 feature_group_count=GROUPS * RADIX,
                                 precision=lax.Precision.HIGHEST)
    y = jnp.maximum(y + b_conv[None, :, None, None], 0.0)
    B = x.shape[0]
    splits = [y[:, r * CHANNELS:(r + 1) * CHANNELS] for r in range(RADIX)]
    gap = sum(splits)
    gap = jnp.mean(gap, axis=(2, 3), keepdims=True)
    h = lax.conv_general_dilated(gap, w_fc1, (1, 1), 'VALID', dimension_numbers=dn,
                                 feature_group_count=GROUPS,
                                 precision=lax.Precision.HIGHEST)
    h = jnp.maximum(h + b_fc1[None, :, None, None], 0.0)
    a = lax.conv_general_dilated(h, w_fc2, (1, 1), 'VALID', dimension_numbers=dn,
                                 feature_group_count=GROUPS,
                                 precision=lax.Precision.HIGHEST)
    a = a + b_fc2[None, :, None, None]
    if RADIX > 1:
        a4 = a.reshape(B, GROUPS, RADIX, -1)
        a4 = jnp.transpose(a4, (0, 2, 1, 3))
        a4 = jax.nn.softmax(a4, axis=1)
        att = a4.reshape(B, -1)
    else:
        att = jax.nn.sigmoid(a.reshape(B, -1))
    attens = [att[:, r * CHANNELS:(r + 1) * CHANNELS] for r in range(RADIX)]
    return sum(at[:, :, None, None] * sp for at, sp in zip(attens, splits))


# ----------------------------- main -----------------------------
if __name__ == "__main__":
    key = jax.random.PRNGKey(0)
    ks = jax.random.split(key, 7)
    B, H, W = 2, 16, 16
    KH, KW = KERNEL_SIZE

    cin_pg = IN_CHANNELS // (GROUPS * RADIX)
    w_conv_t = jax.random.normal(ks[0], (CRAD, cin_pg, KH, KW), jnp.float32) * 0.2
    b_conv = jax.random.normal(ks[1], (CRAD,), jnp.float32) * 0.1
    w_fc1_t = jax.random.normal(ks[2], (INTER, CHANNELS // GROUPS, 1, 1), jnp.float32) * 0.2
    b_fc1 = jax.random.normal(ks[3], (INTER,), jnp.float32) * 0.1
    w_fc2_t = jax.random.normal(ks[4], (CRAD, INTER // GROUPS, 1, 1), jnp.float32) * 0.2
    b_fc2 = jax.random.normal(ks[5], (CRAD,), jnp.float32) * 0.1
    x = jax.random.normal(ks[6], (B, IN_CHANNELS, H, W), jnp.float32)

    # pre-transposed, block-diag densified weights; taps padded to an even count so the
    # in-kernel slab stores are always full 8-sublane tiles (padded columns are zero).
    T = KH * KW
    TP = T + (T % 2)
    dense_conv = grouped_conv_to_dense(w_conv_t, GROUPS * RADIX)         # (T, Cin, CRAD)
    if TP > T:
        dense_conv = jnp.concatenate(
            [dense_conv, jnp.zeros((TP - T, IN_CHANNELS, CRAD), dense_conv.dtype)], axis=0)
    wconvT = jnp.transpose(dense_conv.reshape(TP * IN_CHANNELS, CRAD))   # (CRAD, TP*Cin)
    params = (
        wconvT,
        b_conv[:, None],                                  # (CRAD, 1)
        grouped_1x1_to_dense(w_fc1_t, GROUPS).T,          # (INTER, C)
        b_fc1[:, None],                                   # (INTER, 1)
        grouped_1x1_to_dense(w_fc2_t, GROUPS).T,          # (CRAD, INTER)
        b_fc2[:, None],                                   # (CRAD, 1)
    )

    out = jax.block_until_ready(splat_conv2d(x, params))
    ref = jax.block_until_ready(
        reference(x, w_conv_t, b_conv, w_fc1_t, b_fc1, w_fc2_t, b_fc2))
    np.testing.assert_allclose(np.asarray(out), np.asarray(ref),
                               rtol=2e-3, atol=1e-3)
    print("KERNEL_OK")
</pallas_src>

<mosaic_0001>
module attributes {stable_mosaic.version = 11 : i64} {
  func.func @splat_kernel(%arg0: i32, %arg1: memref<8x384xf32, #tpu.memory_space<vmem>>, %arg2: memref<768x2xf32, #tpu.memory_space<vmem>>, %arg3: memref<8x40xf32, #tpu.memory_space<vmem>>, %arg4: memref<8x1xf32, #tpu.memory_space<vmem>>, %arg5: memref<32x4xf32, #tpu.memory_space<vmem>>, %arg6: memref<32x1xf32, #tpu.memory_space<vmem>>, %arg7: memref<8x32xf32, #tpu.memory_space<vmem>>, %arg8: memref<8x1xf32, #tpu.memory_space<vmem>>, %arg9: memref<8x384xf32, #tpu.memory_space<vmem>>, %arg10: memref<40x768xf32, #tpu.memory_space<vmem>>) attributes {dimension_semantics = [#tpu.dimension_semantics<arbitrary>], iteration_bounds = array<i64: 1>, scalar_prefetch = 0 : i64, scratch_operands = 1 : i64, tpu.core_type = #tpu.core_type<tc>, window_params = [{pipeline_mode = #tpu.pipeline_mode<synchronous>, transform_indices = @transform_0, window_bounds = array<i64: 8, 384>}, {pipeline_mode = #tpu.pipeline_mode<synchronous>, transform_indices = @transform_1, window_bounds = array<i64: 768, 2>}, {pipeline_mode = #tpu.pipeline_mode<synchronous>, transform_indices = @transform_2, window_bounds = array<i64: 8, 40>}, {pipeline_mode = #tpu.pipeline_mode<synchronous>, transform_indices = @transform_3, window_bounds = array<i64: 8, 1>}, {pipeline_mode = #tpu.pipeline_mode<synchronous>, transform_indices = @transform_4, window_bounds = array<i64: 32, 4>}, {pipeline_mode = #tpu.pipeline_mode<synchronous>, transform_indices = @transform_5, window_bounds = array<i64: 32, 1>}, {pipeline_mode = #tpu.pipeline_mode<synchronous>, transform_indices = @transform_6, window_bounds = array<i64: 8, 32>}, {pipeline_mode = #tpu.pipeline_mode<synchronous>, transform_indices = @transform_7, window_bounds = array<i64: 8, 1>}, {pipeline_mode = #tpu.pipeline_mode<synchronous>, transform_indices = @transform_8, window_bounds = array<i64: 8, 384>}]} {
    %c0 = arith.constant 0 : index
    %c0_0 = arith.constant 0 : index
    %0 = vector.load %arg1[%c0, %c0_0] : memref<8x384xf32, #tpu.memory_space<vmem>>, vector<8x384xf32>
    %c383_i32 = arith.constant 383 : i32
    %1 = tpu.dynamic_rotate %0 by %c383_i32 dim 1 : vector<8x384xf32>, i32 -> vector<8x384xf32>
    %2 = vector.extract_strided_slice %0 {offsets = [0, 0], sizes = [4, 384], strides = [1, 1]} : vector<8x384xf32> to vector<4x384xf32>
    %3 = vector.extract_strided_slice %1 {offsets = [0, 0], sizes = [4, 384], strides = [1, 1]} : vector<8x384xf32> to vector<4x384xf32>
    %4 = tpu.concatenate %2, %3 in 0 : vector<4x384xf32>, vector<4x384xf32> -> vector<8x384xf32>
    %c0_1 = arith.constant 0 : index
    %c0_2 = arith.constant 0 : index
    %5 = vector.load %arg10[%c0_1, %c0_2] : memref<40x768xf32, #tpu.memory_space<vmem>>, vector<8x384xf32>
    tpu.vector_store %arg10[%c0_1, %c0_2], %4 {strides = array<i32>} : memref<40x768xf32, #tpu.memory_space<vmem>>, vector<8x384xf32>,
    %6 = vector.extract_strided_slice %0 {offsets = [4, 0], sizes = [4, 384], strides = [1, 1]} : vector<8x384xf32> to vector<4x384xf32>
    %7 = vector.extract_strided_slice %1 {offsets = [4, 0], sizes = [4, 384], strides = [1, 1]} : vector<8x384xf32> to vector<4x384xf32>
    %8 = tpu.concatenate %6, %7 in 0 : vector<4x384xf32>, vector<4x384xf32> -> vector<8x384xf32>
    %c0_3 = arith.constant 0 : index
    %c384 = arith.constant 384 : index
    %9 = vector.load %arg10[%c0_3, %c384] : memref<40x768xf32, #tpu.memory_space<vmem>>, vector<8x384xf32>
    tpu.vector_store %arg10[%c0_3, %c384], %8 {strides = array<i32>} : memref<40x768xf32, #tpu.memory_space<vmem>>, vector<8x384xf32>,
    %c382_i32 = arith.constant 382 : i32
    %10 = tpu.dynamic_rotate %0 by %c382_i32 dim 1 : vector<8x384xf32>, i32 -> vector<8x384xf32>
    %c366_i32 = arith.constant 366 : i32
    %11 = tpu.dynamic_rotate %0 by %c366_i32 dim 1 : vector<8x384xf32>, i32 -> vector<8x384xf32>
    %12 = vector.extract_strided_slice %10 {offsets = [0, 0], sizes = [4, 384], strides = [1, 1]} : vector<8x384xf32> to vector<4x384xf32>
    %13 = vector.extract_strided_slice %11 {offsets = [0, 0], sizes = [4, 384], strides = [1, 1]} : vector<8x384xf32> to vector<4x384xf32>
    %14 = tpu.concatenate %12, %13 in 0 : vector<4x384xf32>, vector<4x384xf32> -> vector<8x384xf32>
    %c8 = arith.constant 8 : index
    %c0_4 = arith.constant 0 : index
    %15 = vector.load %arg10[%c8, %c0_4] : memref<40x768xf32, #tpu.memory_space<vmem>>, vector<8x384xf32>
    tpu.vector_store %arg10[%c8, %c0_4], %14 {strides = array<i32>} : memref<40x768xf32, #tpu.memory_space<vmem>>, vector<8x384xf32>,
    %16 = vector.extract_strided_slice %10 {offsets = [4, 0], sizes = [4, 384], strides = [1, 1]} : vector<8x384xf32> to vector<4x384xf32>
    %17 = vector.extract_strided_slice %11 {offsets = [4, 0], sizes = [4, 384], strides = [1, 1]} : vector<8x384xf32> to vector<4x384xf32>
    %18 = tpu.concatenate %16, %17 in 0 : vector<4x384xf32>, vector<4x384xf32> -> vector<8x384xf32>
    %c8_5 = arith.constant 8 : index
    %c384_6 = arith.constant 384 : index
    %19 = vector.load %arg10[%c8_5, %c384_6] : memref<40x768xf32, #tpu.memory_space<vmem>>, vector<8x384xf32>
    tpu.vector_store %arg10[%c8_5, %c384_6], %18 {strides = array<i32>} : memref<40x768xf32, #tpu.memory_space<vmem>>, vector<8x384xf32>,
    %c365_i32 = arith.constant 365 : i32
    %20 = tpu.dynamic_rotate %0 by %c365_i32 dim 1 : vector<8x384xf32>, i32 -> vector<8x384xf32>
    %c364_i32 = arith.constant 364 : i32
    %21 = tpu.dynamic_rotate %0 by %c364_i32 dim 1 : vector<8x384xf32>, i32 -> vector<8x384xf32>
    %22 = vector.extract_strided_slice %20 {offsets = [0, 0], sizes = [4, 384], strides = [1, 1]} : vector<8x384xf32> to vector<4x384xf32>
    %23 = vector.extract_strided_slice %21 {offsets = [0, 0], sizes = [4, 384], strides = [1, 1]} : vector<8x384xf32> to vector<4x384xf32>
    %24 = tpu.concatenate %22, %23 in 0 : vector<4x384xf32>, vector<4x384xf32> -> vector<8x384xf32>
    %c16 = arith.constant 16 : index
    %c0_7 = arith.constant 0 : index
    %25 = vector.load %arg10[%c16, %c0_7] : memref<40x768xf32, #tpu.memory_space<vmem>>, vector<8x384xf32>
    tpu.vector_store %arg10[%c16, %c0_7], %24 {strides = array<i32>} : memref<40x768xf32, #tpu.memory_space<vmem>>, vector<8x384xf32>,
    %26 = vector.extract_strided_slice %20 {offsets = [4, 0], sizes = [4, 384], strides = [1, 1]} : vector<8x384xf32> to vector<4x384xf32>
    %27 = vector.extract_strided_slice %21 {offsets = [4, 0], sizes = [4, 384], strides = [1, 1]} : vector<8x384xf32> to vector<4x384xf32>
    %28 = tpu.concatenate %26, %27 in 0 : vector<4x384xf32>, vector<4x384xf32> -> vector<8x384xf32>
    %c16_8 = arith.constant 16 : index
    %c384_9 = arith.constant 384 : index
    %29 = vector.load %arg10[%c16_8, %c384_9] : memref<40x768xf32, #tpu.memory_space<vmem>>, vector<8x384xf32>
    tpu.vector_store %arg10[%c16_8, %c384_9], %28 {strides = array<i32>} : memref<40x768xf32, #tpu.memory_space<vmem>>, vector<8x384xf32>,
    %c348_i32 = arith.constant 348 : i32
    %30 = tpu.dynamic_rotate %0 by %c348_i32 dim 1 : vector<8x384xf32>, i32 -> vector<8x384xf32>
    %c347_i32 = arith.constant 347 : i32
    %31 = tpu.dynamic_rotate %0 by %c347_i32 dim 1 : vector<8x384xf32>, i32 -> vector<8x384xf32>
    %32 = vector.extract_strided_slice %30 {offsets = [0, 0], sizes = [4, 384], strides = [1, 1]} : vector<8x384xf32> to vector<4x384xf32>
    %33 = vector.extract_strided_slice %31 {offsets = [0, 0], sizes = [4, 384], strides = [1, 1]} : vector<8x384xf32> to vector<4x384xf32>
    %34 = tpu.concatenate %32, %33 in 0 : vector<4x384xf32>, vector<4x384xf32> -> vector<8x384xf32>
    %c24 = arith.constant 24 : index
    %c0_10 = arith.constant 0 : index
    %35 = vector.load %arg10[%c24, %c0_10] : memref<40x768xf32, #tpu.memory_space<vmem>>, vector<8x384xf32>
    tpu.vector_store %arg10[%c24, %c0_10], %34 {strides = array<i32>} : memref<40x768xf32, #tpu.memory_space<vmem>>, vector<8x384xf32>,
    %36 = vector.extract_strided_slice %30 {offsets = [4, 0], sizes = [4, 384], strides = [1, 1]} : vector<8x384xf32> to vector<4x384xf32>
    %37 = vector.extract_strided_slice %31 {offsets = [4, 0], sizes = [4, 384], strides = [1, 1]} : vector<8x384xf32> to vector<4x384xf32>
    %38 = tpu.concatenate %36, %37 in 0 : vector<4x384xf32>, vector<4x384xf32> -> vector<8x384xf32>
    %c24_11 = arith.constant 24 : index
    %c384_12 = arith.constant 384 : index
    %39 = vector.load %arg10[%c24_11, %c384_12] : memref<40x768xf32, #tpu.memory_space<vmem>>, vector<8x384xf32>
    tpu.vector_store %arg10[%c24_11, %c384_12], %38 {strides = array<i32>} : memref<40x768xf32, #tpu.memory_space<vmem>>, vector<8x384xf32>,
    %c346_i32 = arith.constant 346 : i32
    %40 = tpu.dynamic_rotate %0 by %c346_i32 dim 1 : vector<8x384xf32>, i32 -> vector<8x384xf32>
    %cst = arith.constant 0.000000e+00 : f32
    %41 = vector.broadcast %cst : f32 to vector<8x384xf32>
    %42 = vector.extract_strided_slice %40 {offsets = [0, 0], sizes = [4, 384], strides = [1, 1]} : vector<8x384xf32> to vector<4x384xf32>
    %43 = vector.extract_strided_slice %41 {offsets = [0, 0], sizes = [4, 384], strides = [1, 1]} : vector<8x384xf32> to vector<4x384xf32>
    %44 = tpu.concatenate %42, %43 in 0 : vector<4x384xf32>, vector<4x384xf32> -> vector<8x384xf32>
    %c32 = arith.constant 32 : index
    %c0_13 = arith.constant 0 : index
    %45 = vector.load %arg10[%c32, %c0_13] : memref<40x768xf32, #tpu.memory_space<vmem>>, vector<8x384xf32>
    tpu.vector_store %arg10[%c32, %c0_13], %44 {strides = array<i32>} : memref<40x768xf32, #tpu.memory_space<vmem>>, vector<8x384xf32>,
    %46 = vector.extract_strided_slice %40 {offsets = [4, 0], sizes = [4, 384], strides = [1, 1]} : vector<8x384xf32> to vector<4x384xf32>
    %47 = vector.extract_strided_slice %41 {offsets = [4, 0], sizes = [4, 384], strides = [1, 1]} : vector<8x384xf32> to vector<4x384xf32>
    %48 = tpu.concatenate %46, %47 in 0 : vector<4x384xf32>, vector<4x384xf32> -> vector<8x384xf32>
    %c32_14 = arith.constant 32 : index
    %c384_15 = arith.constant 384 : index
    %49 = vector.load %arg10[%c32_14, %c384_15] : memref<40x768xf32, #tpu.memory_space<vmem>>, vector<8x384xf32>
    tpu.vector_store %arg10[%c32_14, %c384_15], %48 {strides = array<i32>} : memref<40x768xf32, #tpu.memory_space<vmem>>, vector<8x384xf32>,
    %c0_16 = arith.constant 0 : index
    %c0_17 = arith.constant 0 : index
    %50 = vector.load %arg3[%c0_16, %c0_17] : memref<8x40xf32, #tpu.memory_space<vmem>>, vector<8x40xf32>
    %c0_18 = arith.constant 0 : index
    %c0_19 = arith.constant 0 : index
    %51 = vector.load %arg10[%c0_18, %c0_19] : memref<40x768xf32, #tpu.memory_space<vmem>>, vector<40x768xf32>
    %cst_20 = arith.constant dense<0.000000e+00> : vector<8x768xf32>
    %52 = tpu.matmul %50, %51, %cst_20 {dimension_numbers = #tpu.dot_dimension_numbers<[1], [0], [0], [1], [0, 0, 1, 1], [], []>} : vector<8x40xf32>, vector<40x768xf32>, vector<8x768xf32> -> vector<8x768xf32>
    %c0_21 = arith.constant 0 : index
    %c0_22 = arith.constant 0 : index
    %53 = vector.load %arg4[%c0_21, %c0_22] : memref<8x1xf32, #tpu.memory_space<vmem>>, vector<8x1xf32>
    %54 = vector.broadcast %53 : vector<8x1xf32> to vector<8x768xf32>
    %55 = arith.addf %52, %54 : vector<8x768xf32>
    %cst_23 = arith.constant 0.000000e+00 : f32
    %56 = vector.broadcast %cst_23 : f32 to vector<8x768xf32>
    %57 = arith.maximumf %55, %56 : vector<8x768xf32>
    %58 = vector.extract_strided_slice %57 {offsets = [0, 0], sizes = [4, 768], strides = [1, 1]} : vector<8x768xf32> to vector<4x768xf32>
    %59 = vector.extract_strided_slice %57 {offsets = [4, 0], sizes = [4, 768], strides = [1, 1]} : vector<8x768xf32> to vector<4x768xf32>
    %60 = arith.addf %58, %59 : vector<4x768xf32>
    %c0_24 = arith.constant 0 : index
    %c0_25 = arith.constant 0 : index
    %61 = vector.load %arg2[%c0_24, %c0_25] : memref<768x2xf32, #tpu.memory_space<vmem>>, vector<768x2xf32>
    %cst_26 = arith.constant dense<0.000000e+00> : vector<4x2xf32>
    %62 = tpu.matmul %60, %61, %cst_26 {dimension_numbers = #tpu.dot_dimension_numbers<[1], [0], [0], [1], [0, 0, 1, 1], [], []>} : vector<4x768xf32>, vector<768x2xf32>, vector<4x2xf32> -> vector<4x2xf32>
    %c0_27 = arith.constant 0 : index
    %c0_28 = arith.constant 0 : index
    %63 = vector.load %arg5[%c0_27, %c0_28] : memref<32x4xf32, #tpu.memory_space<vmem>>, vector<32x4xf32>
    %cst_29 = arith.constant dense<0.000000e+00> : vector<32x2xf32>
    %64 = tpu.matmul %63, %62, %cst_29 {dimension_numbers = #tpu.dot_dimension_numbers<[1], [0], [0], [1], [0, 0, 1, 1], [], []>} : vector<32x4xf32>, vector<4x2xf32>, vector<32x2xf32> -> vector<32x2xf32>
    %c0_30 = arith.constant 0 : index
    %c0_31 = arith.constant 0 : index
    %65 = vector.load %arg6[%c0_30, %c0_31] : memref<32x1xf32, #tpu.memory_space<vmem>>, vector<32x1xf32>
    %66 = vector.broadcast %65 : vector<32x1xf32> to vector<32x2xf32>
    %67 = arith.addf %64, %66 : vector<32x2xf32>
    %cst_32 = arith.constant 0.000000e+00 : f32
    %68 = vector.broadcast %cst_32 : f32 to vector<32x2xf32>
    %69 = arith.maximumf %67, %68 : vector<32x2xf32>
    %c0_33 = arith.constant 0 : index
    %c0_34 = arith.constant 0 : index
    %70 = vector.load %arg7[%c0_33, %c0_34] : memref<8x32xf32, #tpu.memory_space<vmem>>, vector<8x32xf32>
    %cst_35 = arith.constant dense<0.000000e+00> : vector<8x2xf32>
    %71 = tpu.matmul %70, %69, %cst_35 {dimension_numbers = #tpu.dot_dimension_numbers<[1], [0], [0], [1], [0, 0, 1, 1], [], []>} : vector<8x32xf32>, vector<32x2xf32>, vector<8x2xf32> -> vector<8x2xf32>
    %c0_36 = arith.constant 0 : index
    %c0_37 = arith.constant 0 : index
    %72 = vector.load %arg8[%c0_36, %c0_37] : memref<8x1xf32, #tpu.memory_space<vmem>>, vector<8x1xf32>
    %73 = vector.broadcast %72 : vector<8x1xf32> to vector<8x2xf32>
    %74 = arith.addf %71, %73 : vector<8x2xf32>
    %75 = vector.extract_strided_slice %74 {offsets = [0, 0], sizes = [4, 2], strides = [1, 1]} : vector<8x2xf32> to vector<4x2xf32>
    %76 = vector.extract_strided_slice %74 {offsets = [4, 0], sizes = [4, 2], strides = [1, 1]} : vector<8x2xf32> to vector<4x2xf32>
    %77 = arith.maximumf %75, %76 : vector<4x2xf32>
    %78 = arith.subf %75, %77 : vector<4x2xf32>
    %79 = math.exp %78 : vector<4x2xf32>
    %80 = arith.subf %76, %77 : vector<4x2xf32>
    %81 = math.exp %80 : vector<4x2xf32>
    %82 = arith.addf %79, %81 : vector<4x2xf32>
    %83 = tpu.reciprocal %82 {approx = true} : vector<4x2xf32> -> vector<4x2xf32>
    %84 = arith.mulf %79, %83 : vector<4x2xf32>
    %85 = arith.mulf %81, %83 : vector<4x2xf32>
    %86 = vector.extract_strided_slice %84 {offsets = [0, 0], sizes = [4, 1], strides = [1, 1]} : vector<4x2xf32> to vector<4x1xf32>
    %87 = vector.extract_strided_slice %57 {offsets = [0, 0], sizes = [4, 384], strides = [1, 1]} : vector<8x768xf32> to vector<4x384xf32>
    %88 = vector.broadcast %86 : vector<4x1xf32> to vector<4x384xf32>
    %89 = arith.mulf %88, %87 : vector<4x384xf32>
    %90 = vector.extract_strided_slice %85 {offsets = [0, 0], sizes = [4, 1], strides = [1, 1]} : vector<4x2xf32> to vector<4x1xf32>
    %91 = vector.extract_strided_slice %57 {offsets = [4, 0], sizes = [4, 384], strides = [1, 1]} : vector<8x768xf32> to vector<4x384xf32>
    %92 = vector.broadcast %90 : vector<4x1xf32> to vector<4x384xf32>
    %93 = arith.mulf %92, %91 : vector<4x384xf32>
    %94 = arith.addf %89, %93 : vector<4x384xf32>
    %95 = vector.extract_strided_slice %84 {offsets = [0, 1], sizes = [4, 1], strides = [1, 1]} : vector<4x2xf32> to vector<4x1xf32>
    %96 = vector.extract_strided_slice %57 {offsets = [0, 384], sizes = [4, 384], strides = [1, 1]} : vector<8x768xf32> to vector<4x384xf32>
    %97 = vector.broadcast %95 : vector<4x1xf32> to vector<4x384xf32>
    %98 = arith.mulf %97, %96 : vector<4x384xf32>
    %99 = vector.extract_strided_slice %85 {offsets = [0, 1], sizes = [4, 1], strides = [1, 1]} : vector<4x2xf32> to vector<4x1xf32>
    %100 = vector.extract_strided_slice %57 {offsets = [4, 384], sizes = [4, 384], strides = [1, 1]} : vector<8x768xf32> to vector<4x384xf32>
    %101 = vector.broadcast %99 : vector<4x1xf32> to vector<4x384xf32>
    %102 = arith.mulf %101, %100 : vector<4x384xf32>
    %103 = arith.addf %98, %102 : vector<4x384xf32>
    %104 = tpu.concatenate %94, %103 in 0 : vector<4x384xf32>, vector<4x384xf32> -> vector<8x384xf32>
    %c0_38 = arith.constant 0 : index
    %c0_39 = arith.constant 0 : index
    %105 = vector.load %arg9[%c0_38, %c0_39] : memref<8x384xf32, #tpu.memory_space<vmem>>, vector<8x384xf32>
    tpu.vector_store %arg9[%c0_38, %c0_39], %104 {strides = array<i32>} : memref<8x384xf32, #tpu.memory_space<vmem>>, vector<8x384xf32>,
    return
  }
  func.func @transform_0(%arg0: i32) -> (i32, i32) {
    %c0_i32 = arith.constant 0 : i32
    %c0_i32_0 = arith.constant 0 : i32
    %c0_i32_1 = arith.constant 0 : i32
    return %c0_i32, %c0_i32_0 : i32, i32
  }
  func.func @transform_1(%arg0: i32) -> (i32, i32) {
    %c0_i32 = arith.constant 0 : i32
    %c0_i32_0 = arith.constant 0 : i32
    %c0_i32_1 = arith.constant 0 : i32
    return %c0_i32, %c0_i32_0 : i32, i32
  }
  func.func @transform_2(%arg0: i32) -> (i32, i32) {
    %c0_i32 = arith.constant 0 : i32
    %c0_i32_0 = arith.constant 0 : i32
    %c0_i32_1 = arith.constant 0 : i32
    return %c0_i32, %c0_i32_0 : i32, i32
  }
  func.func @transform_3(%arg0: i32) -> (i32, i32) {
    %c0_i32 = arith.constant 0 : i32
    %c0_i32_0 = arith.constant 0 : i32
    %c0_i32_1 = arith.constant 0 : i32
    return %c0_i32, %c0_i32_0 : i32, i32
  }
  func.func @transform_4(%arg0: i32) -> (i32, i32) {
    %c0_i32 = arith.constant 0 : i32
    %c0_i32_0 = arith.constant 0 : i32
    %c0_i32_1 = arith.constant 0 : i32
    return %c0_i32, %c0_i32_0 : i32, i32
  }
  func.func @transform_5(%arg0: i32) -> (i32, i32) {
    %c0_i32 = arith.constant 0 : i32
    %c0_i32_0 = arith.constant 0 : i32
    %c0_i32_1 = arith.constant 0 : i32
    return %c0_i32, %c0_i32_0 : i32, i32
  }
  func.func @transform_6(%arg0: i32) -> (i32, i32) {
    %c0_i32 = arith.constant 0 : i32
    %c0_i32_0 = arith.constant 0 : i32
    %c0_i32_1 = arith.constant 0 : i32
    return %c0_i32, %c0_i32_0 : i32, i32
  }
  func.func @transform_7(%arg0: i32) -> (i32, i32) {
    %c0_i32 = arith.constant 0 : i32
    %c0_i32_0 = arith.constant 0 : i32
    %c0_i32_1 = arith.constant 0 : i32
    return %c0_i32, %c0_i32_0 : i32, i32
  }
  func.func @transform_8(%arg0: i32) -> (i32, i32) {
    %c0_i32 = arith.constant 0 : i32
    %c0_i32_0 = arith.constant 0 : i32
    %c0_i32_1 = arith.constant 0 : i32
    return %c0_i32, %c0_i32_0 : i32, i32
  }
}

</mosaic_0001>

<llo_original>
// kernel: tpu_custom_call.1
$region0: #{tpu_custom_call.1}
  #allocation0 [shape = 'u32[]', space=smem, size = 0x4, offset = 0x4, fixed_abs, tag = 'smem constant byte address 0x4 - core index']
  #allocation1 [shape = 'u32[144,128]{1,0:T(1,128)}', space=vmem, size = 0x12000, scoped, tag = 'internal scratch']
  #allocation2 [shape = 'f32[40,768]{1,0:T(8,128)}', space=vmem, size = 0x1e000, scoped, tag = 'scratch operand']
  %s0 = inlined_call_operand.vmem [shape: f32[8,384], index: 0, kind: input, shape index: {}]
  %s1 = inlined_call_operand.vmem [shape: f32[768,2], index: 1, kind: input, shape index: {}]
  %s2 = inlined_call_operand.vmem [shape: f32[8,40], index: 2, kind: input, shape index: {}]
  %s3 = inlined_call_operand.vmem [shape: f32[8,1], index: 3, kind: input, shape index: {}]
  %s4 = inlined_call_operand.vmem [shape: f32[32,4], index: 4, kind: input, shape index: {}]
  %s5 = inlined_call_operand.vmem [shape: f32[32,1], index: 5, kind: input, shape index: {}]
  %s6 = inlined_call_operand.vmem [shape: f32[8,32], index: 6, kind: input, shape index: {}]
  %s7 = inlined_call_operand.vmem [shape: f32[8,1], index: 7, kind: input, shape index: {}]
  %s8 = inlined_call_operand.hbm [shape: f32[8,384], index: 8, kind: output, shape index: {}]
  %s9 = sld [smem:[#allocation0]]
  $region42: #{tpu_custom_call.1} parent=0
    _
  %s11 = ssub.s32 1, %s9
  %s12 = scalar_select 0, %s11, %s9
  $region1: #{tpu_custom_call.1} parent=0
    #allocation3 [shape = 'u8[12288]{0}', space=vmem, size = 0x3000, scoped, tag = 'output window, operand 0, single buffered']
    #allocation4 [shape = 's32[1]{0}', space=sflag, size = 0x4, scoped, tag = 'scoped memory for tpu_custom_call.1']
    %13 = vsyncpa [#allocation4], 0
    // Predicated region
    $region2: #{tpu_custom_call.1} parent=1 // pred_check
      _
    $region3: #{tpu_custom_call.1} parent=1 // pred_check_branch
      %15 = sbr.rel (0) target = $region5
    $region4: #{tpu_custom_call.1} parent=1 // pred_region
      _
    $region5: #{tpu_custom_call.1} parent=1 // pred_fallthru
      _
    // Predicated region
    $region6: #{tpu_custom_call.1} parent=1 // pred_check
      _
    $region7: #{tpu_custom_call.1} parent=1 // pred_check_branch
      %17 = sbr.rel (0) target = $region9
    $region8: #{tpu_custom_call.1} parent=1 // pred_region
      _
    $region9: #{tpu_custom_call.1} parent=1 // pred_fallthru
      _
    // Predicated region
    $region10: #{tpu_custom_call.1} parent=1 // pred_check
      _
    $region11: #{tpu_custom_call.1} parent=1 // pred_check_branch
      %19 = sbr.rel (0) target = $region13
    $region12: #{tpu_custom_call.1} parent=1 // pred_region
      _
    $region13: #{tpu_custom_call.1} parent=1 // pred_fallthru
      _
    // Predicated region
    $region14: #{tpu_custom_call.1} parent=1 // pred_check
      _
    $region15: #{tpu_custom_call.1} parent=1 // pred_check_branch
      %21 = sbr.rel (0) target = $region17
    $region16: #{tpu_custom_call.1} parent=1 // pred_region
      _
    $region17: #{tpu_custom_call.1} parent=1 // pred_fallthru
      _
    // Predicated region
    $region18: #{tpu_custom_call.1} parent=1 // pred_check
      _
    $region19: #{tpu_custom_call.1} parent=1 // pred_check_branch
      %23 = sbr.rel (0) target = $region21
    $region20: #{tpu_custom_call.1} parent=1 // pred_region
      _
    $region21: #{tpu_custom_call.1} parent=1 // pred_fallthru
      _
    // Predicated region
    $region22: #{tpu_custom_call.1} parent=1 // pred_check
      _
    $region23: #{tpu_custom_call.1} parent=1 // pred_check_branch
      %25 = sbr.rel (0) target = $region25
    $region24: #{tpu_custom_call.1} parent=1 // pred_region
      _
    $region25: #{tpu_custom_call.1} parent=1 // pred_fallthru
      _
    // Predicated region
    $region26: #{tpu_custom_call.1} parent=1 // pred_check
      _
    $region27: #{tpu_custom_call.1} parent=1 // pred_check_branch
      %27 = sbr.rel (0) target = $region29
    $region28: #{tpu_custom_call.1} parent=1 // pred_region
      _
    $region29: #{tpu_custom_call.1} parent=1 // pred_fallthru
      _
    // Predicated region
    $region30: #{tpu_custom_call.1} parent=1 // pred_check
      _
    $region31: #{tpu_custom_call.1} parent=1 // pred_check_branch
      %29 = sbr.rel (0) target = $region33
    $region32: #{tpu_custom_call.1} parent=1 // pred_region
      _
    $region33: #{tpu_custom_call.1} parent=1 // pred_fallthru
      _
    %v30 = vld [vmem:[%s0] sm:$0xff]
    %v31 = vld [vmem:[%s0 + $0x8] sm:$0xff]
    %v32 = vld [vmem:[%s0 + $0x10] sm:$0xff]
    %33 = vrot.lane.b32.xlu0 %v30, 127
    %v34 = vpop.permute.xlu0 %33
    %35 = vrot.lane.b32.xlu0 %v31, 127
    %v36 = vpop.permute.xlu0 %35
    %37 = vrot.lane.b32.xlu0 %v32, 127
    %v38 = vpop.permute.xlu0 %37
    %v39 = vlaneseq
    %v40 = vand.u32 %v39, 127
    %vm41 = vcmp.lt.s32.totalorder %v40, 127
    %v42 = vsel %vm41, %v36, %v38
    %v43 = vsel %vm41, %v34, %v36
    %v44 = vsel %vm41, %v38, %v34
    %v48 = vrot.slane %v43, 4
    %v49 = vrot.slane %v42, 4
    %v50 = vrot.slane %v44, 4
    %vm54 = vcmask 1043456
    %v55 = vsel %vm54, %v30, %v48
    %v56 = vsel %vm54, %v31, %v49
    %v57 = vsel %vm54, %v32, %v50
    %58 = vst [vmem:[#allocation2] sm:$0xff] %v55
    %59 = vst [vmem:[#allocation2 + $0x8] sm:$0xff] %v56
    %60 = vst [vmem:[#allocation2 + $0x10] sm:$0xff] %v57
    %v64 = vrot.slane %v30, 4
    %v65 = vrot.slane %v31, 4
    %v66 = vrot.slane %v32, 4
    %v70 = vsel %vm54, %v64, %v43
    %v71 = vsel %vm54, %v65, %v42
    %v72 = vsel %vm54, %v66, %v44
    %73 = vst [vmem:[#allocation2 + $0x18] sm:$0xff] %v70
    %74 = vst [vmem:[#allocation2 + $0x20] sm:$0xff] %v71
    %75 = vst [vmem:[#allocation2 + $0x28] sm:$0xff] %v72
    %76 = vrot.lane.b32.xlu0 %v30, 126
    %v77 = vpop.permute.xlu0 %76
    %78 = vrot.lane.b32.xlu0 %v31, 126
    %v79 = vpop.permute.xlu0 %78
    %80 = vrot.lane.b32.xlu0 %v32, 126
    %v81 = vpop.permute.xlu0 %80
    %vm82 = vcmp.lt.s32.totalorder %v40, 126
    %v83 = vsel %vm82, %v79, %v81
    %v84 = vsel %vm82, %v77, %v79
    %v85 = vsel %vm82, %v81, %v77
    %86 = vrot.lane.b32.xlu0 %v30, 110
    %v87 = vpop.permute.xlu0 %86
    %88 = vrot.lane.b32.xlu0 %v31, 110
    %v89 = vpop.permute.xlu0 %88
    %90 = vrot.lane.b32.xlu0 %v32, 110
    %v91 = vpop.permute.xlu0 %90
    %vm92 = vcmp.lt.s32.totalorder %v40, 110
    %v93 = vsel %vm92, %v89, %v91
    %v94 = vsel %vm92, %v87, %v89
    %v95 = vsel %vm92, %v91, %v87
    %v99 = vrot.slane %v94, 4
    %v100 = vrot.slane %v93, 4
    %v101 = vrot.slane %v95, 4
    %v105 = vsel %vm54, %v84, %v99
    %v106 = vsel %vm54, %v83, %v100
    %v107 = vsel %vm54, %v85, %v101
    %108 = vst [vmem:[#allocation2 + $0x30] sm:$0xff] %v105
    %109 = vst [vmem:[#allocation2 + $0x38] sm:$0xff] %v106
    %110 = vst [vmem:[#allocation2 + $0x40] sm:$0xff] %v107
    %v114 = vrot.slane %v84, 4
    %v115 = vrot.slane %v83, 4
    %v116 = vrot.slane %v85, 4
    %v120 = vsel %vm54, %v114, %v94
    %v121 = vsel %vm54, %v115, %v93
    %v122 = vsel %vm54, %v116, %v95
    %123 = vst [vmem:[#allocation2 + $0x48] sm:$0xff] %v120
    %124 = vst [vmem:[#allocation2 + $0x50] sm:$0xff] %v121
    %125 = vst [vmem:[#allocation2 + $0x58] sm:$0xff] %v122
    %126 = vrot.lane.b32.xlu0 %v30, 109
    %v127 = vpop.permute.xlu0 %126
    %128 = vrot.lane.b32.xlu0 %v31, 109
    %v129 = vpop.permute.xlu0 %128
    %130 = vrot.lane.b32.xlu0 %v32, 109
    %v131 = vpop.permute.xlu0 %130
    %vm132 = vcmp.lt.s32.totalorder %v40, 109
    %v133 = vsel %vm132, %v129, %v131
    %v134 = vsel %vm132, %v127, %v129
    %v135 = vsel %vm132, %v131, %v127
    %136 = vrot.lane.b32.xlu0 %v30, 108
    %v137 = vpop.permute.xlu0 %136
    %138 = vrot.lane.b32.xlu0 %v31, 108
    %v139 = vpop.permute.xlu0 %138
    %140 = vrot.lane.b32.xlu0 %v32, 108
    %v141 = vpop.permute.xlu0 %140
    %vm142 = vcmp.lt.s32.totalorder %v40, 108
    %v143 = vsel %vm142, %v139, %v141
    %v144 = vsel %vm142, %v137, %v139
    %v145 = vsel %vm142, %v141, %v137
    %v149 = vrot.slane %v144, 4
    %v150 = vrot.slane %v143, 4
    %v151 = vrot.slane %v145, 4
    %v155 = vsel %vm54, %v134, %v149
    %v156 = vsel %vm54, %v133, %v150
    %v157 = vsel %vm54, %v135, %v151
    %158 = vst [vmem:[#allocation2 + $0x60] sm:$0xff] %v155
    %159 = vst [vmem:[#allocation2 + $0x68] sm:$0xff] %v156
    %160 = vst [vmem:[#allocation2 + $0x70] sm:$0xff] %v157
    %v164 = vrot.slane %v134, 4
    %v165 = vrot.slane %v133, 4
    %v166 = vrot.slane %v135, 4
    %v170 = vsel %vm54, %v164, %v144
    %v171 = vsel %vm54, %v165, %v143
    %v172 = vsel %vm54, %v166, %v145
    %173 = vst [vmem:[#allocation2 + $0x78] sm:$0xff] %v170
    %174 = vst [vmem:[#allocation2 + $0x80] sm:$0xff] %v171
    %175 = vst [vmem:[#allocation2 + $0x88] sm:$0xff] %v172
    %176 = vrot.lane.b32.xlu0 %v30, 92
    %v177 = vpop.permute.xlu0 %176
    %178 = vrot.lane.b32.xlu0 %v31, 92
    %v179 = vpop.permute.xlu0 %178
    %180 = vrot.lane.b32.xlu0 %v32, 92
    %v181 = vpop.permute.xlu0 %180
    %vm182 = vcmp.lt.s32.totalorder %v40, 92
    %v183 = vsel %vm182, %v179, %v181
    %v184 = vsel %vm182, %v177, %v179
    %v185 = vsel %vm182, %v181, %v177
    %186 = vrot.lane.b32.xlu0 %v30, 91
    %v187 = vpop.permute.xlu0 %186
    %188 = vrot.lane.b32.xlu0 %v31, 91
    %v189 = vpop.permute.xlu0 %188
    %190 = vrot.lane.b32.xlu0 %v32, 91
    %v191 = vpop.permute.xlu0 %190
    %vm192 = vcmp.lt.s32.totalorder %v40, 91
    %v193 = vsel %vm192, %v189, %v191
    %v194 = vsel %vm192, %v187, %v189
    %v195 = vsel %vm192, %v191, %v187
    %v199 = vrot.slane %v194, 4
    %v200 = vrot.slane %v193, 4
    %v201 = vrot.slane %v195, 4
    %v205 = vsel %vm54, %v184, %v199
    %v206 = vsel %vm54, %v183, %v200
    %v207 = vsel %vm54, %v185, %v201
    %208 = vst [vmem:[#allocation2 + $0x90] sm:$0xff] %v205
    %209 = vst [vmem:[#allocation2 + $0x98] sm:$0xff] %v206
    %210 = vst [vmem:[#allocation2 + $0xa0] sm:$0xff] %v207
    %v214 = vrot.slane %v184, 4
    %v215 = vrot.slane %v183, 4
    %v216 = vrot.slane %v185, 4
    %v220 = vsel %vm54, %v214, %v194
    %v221 = vsel %vm54, %v215, %v193
    %v222 = vsel %vm54, %v216, %v195
    %223 = vst [vmem:[#allocation2 + $0xa8] sm:$0xff] %v220
    %224 = vst [vmem:[#allocation2 + $0xb0] sm:$0xff] %v221
    %225 = vst [vmem:[#allocation2 + $0xb8] sm:$0xff] %v222
    %226 = vrot.lane.b32.xlu0 %v30, 90
    %v227 = vpop.permute.xlu0 %226
    %228 = vrot.lane.b32.xlu0 %v31, 90
    %v229 = vpop.permute.xlu0 %228
    %230 = vrot.lane.b32.xlu0 %v32, 90
    %v231 = vpop.permute.xlu0 %230
    %vm232 = vcmp.lt.s32.totalorder %v40, 90
    %v233 = vsel %vm232, %v229, %v231
    %v234 = vsel %vm232, %v227, %v229
    %v235 = vsel %vm232, %v231, %v227
    %v236 = vsel %vm54, %v234, 0.0
    %v237 = vsel %vm54, %v233, 0.0
    %v238 = vsel %vm54, %v235, 0.0
    %239 = vst [vmem:[#allocation2 + $0xc0] sm:$0xff] %v236
    %240 = vst [vmem:[#allocation2 + $0xc8] sm:$0xff] %v237
    %241 = vst [vmem:[#allocation2 + $0xd0] sm:$0xff] %v238
    %v245 = vrot.slane %v234, 4
    %v246 = vrot.slane %v233, 4
    %v247 = vrot.slane %v235, 4
    %v251 = vsel %vm54, %v245, 0.0
    %v252 = vsel %vm54, %v246, 0.0
    %v253 = vsel %vm54, %v247, 0.0
    %254 = vst [vmem:[#allocation2 + $0xd8] sm:$0xff] %v251
    %255 = vst [vmem:[#allocation2 + $0xe0] sm:$0xff] %v252
    %256 = vst [vmem:[#allocation2 + $0xe8] sm:$0xff] %v253
    %v257 = vld [vmem:[%s2] sm:$0xff]
    %v258 = vld [vmem:[#allocation2] sm:$0xff]
    %v259 = vld [vmem:[#allocation2 + $0x8] sm:$0xff]
    %v260 = vld [vmem:[#allocation2 + $0x10] sm:$0xff]
    %v261 = vld [vmem:[#allocation2 + $0x18] sm:$0xff]
    %v262 = vld [vmem:[#allocation2 + $0x20] sm:$0xff]
    %v263 = vld [vmem:[#allocation2 + $0x28] sm:$0xff]
    %v264 = vld [vmem:[#allocation2 + $0x30] sm:$0xff]
    %v265 = vld [vmem:[#allocation2 + $0x38] sm:$0xff]
    %v266 = vld [vmem:[#allocation2 + $0x40] sm:$0xff]
    %v267 = vld [vmem:[#allocation2 + $0x48] sm:$0xff]
    %v268 = vld [vmem:[#allocation2 + $0x50] sm:$0xff]
    %v269 = vld [vmem:[#allocation2 + $0x58] sm:$0xff]
    %v270 = vld [vmem:[#allocation2 + $0x60] sm:$0xff]
    %v271 = vld [vmem:[#allocation2 + $0x68] sm:$0xff]
    %v272 = vld [vmem:[#allocation2 + $0x70] sm:$0xff]
    %v273 = vld [vmem:[#allocation2 + $0x78] sm:$0xff]
    %v274 = vld [vmem:[#allocation2 + $0x80] sm:$0xff]
    %v275 = vld [vmem:[#allocation2 + $0x88] sm:$0xff]
    %v276 = vld [vmem:[#allocation2 + $0x90] sm:$0xff]
    %v277 = vld [vmem:[#allocation2 + $0x98] sm:$0xff]
    %v278 = vld [vmem:[#allocation2 + $0xa0] sm:$0xff]
    %v279 = vld [vmem:[#allocation2 + $0xa8] sm:$0xff]
    %v280 = vld [vmem:[#allocation2 + $0xb0] sm:$0xff]
    %v281 = vld [vmem:[#allocation2 + $0xb8] sm:$0xff]
    %v282 = vld [vmem:[#allocation2 + $0xc0] sm:$0xff]
    %v283 = vld [vmem:[#allocation2 + $0xc8] sm:$0xff]
    %v284 = vld [vmem:[#allocation2 + $0xd0] sm:$0xff]
    %v285 = vld [vmem:[#allocation2 + $0xd8] sm:$0xff]
    %v286 = vld [vmem:[#allocation2 + $0xe0] sm:$0xff]
    %v287 = vld [vmem:[#allocation2 + $0xe8] sm:$0xff]
    %v288 = vld [vmem:[%s3] sm:$0xff]
    %290 = vset.pattern.permute.xlu0 0
    %291 = vperm.xlu0 %290, %v288
    %v292 = vpop.permute.xlu0 %291
    %vm294 = vcmask 326656
    %v296 = vsel %vm294, %v257, 0
    %298 = vmatprep.subr.mxu0 0.0
    %299 = vmatpush1.msra.mxu0 0.0
    %300 = vmatprep.subr.mxu0 0.0
    %301 = vmatpush1.msra.mxu0 0.0
    %302 = vmatprep.subr.mxu0 0.0
    %303 = vmatpush1.msra.mxu0 0.0
    %304 = vmatprep.subr.mxu0 0.0
    %305 = vmatpush1.msra.mxu0 0.0
    %306 = vmatprep.subr.mxu0 0.0
    %307 = vmatpush1.msra.mxu0 0.0
    %308 = vmatprep.subr.mxu0 0.0
    %309 = vmatpush1.msra.mxu0 0.0
    %310 = vmatprep.subr.mxu0 0.0
    %311 = vmatpush1.msra.mxu0 0.0
    %312 = vmatprep.subr.mxu0 0.0
    %313 = vmatpush1.msra.mxu0 0.0
    %314 = vmatprep.subr.mxu0 0.0
    %315 = vmatpush1.msra.mxu0 0.0
    %316 = vmatprep.subr.mxu0 0.0
    %317 = vmatpush1.msra.mxu0 0.0
    %318 = vmatprep.subr.mxu0 0.0
    %319 = vmatpush1.msra.mxu0 0.0
    %320 = vmatprep.subr.mxu0 %v283
    %321 = vmatpush1.msra.mxu0 %v282
    %322 = vmatprep.subr.mxu0 %v277
    %323 = vmatpush1.msra.mxu0 %v276
    %324 = vmatprep.subr.mxu0 %v271
    %325 = vmatpush1.msra.mxu0 %v270
    %326 = vmatprep.subr.mxu0 %v265
    %327 = vmatpush1.msra.mxu0 %v264
    %328 = vmatprep.subr.mxu0 %v259
    %329 = vmatpush1.msra.mxu0 %v258
    %330 = vmatprep.subr.mxu0 0.0
    %331 = vmatpush2.msra.mxu0 0.0
    %332 = vmatprep.subr.mxu0 0.0
    %333 = vmatpush2.msra.mxu0 0.0
    %334 = vmatprep.subr.mxu0 0.0
    %335 = vmatpush2.msra.mxu0 0.0
    %336 = vmatprep.subr.mxu0 0.0
    %337 = vmatpush2.msra.mxu0 0.0
    %338 = vmatprep.subr.mxu0 0.0
    %339 = vmatpush2.msra.mxu0 0.0
    %340 = vmatprep.subr.mxu0 0.0
    %341 = vmatpush2.msra.mxu0 0.0
    %342 = vmatprep.subr.mxu0 0.0
    %343 = vmatpush2.msra.mxu0 0.0
    %344 = vmatprep.subr.mxu0 0.0
    %345 = vmatpush2.msra.mxu0 0.0
    %346 = vmatprep.subr.mxu0 0.0
    %347 = vmatpush2.msra.mxu0 0.0
    %348 = vmatprep.subr.mxu0 0.0
    %349 = vmatpush2.msra.mxu0 0.0
    %350 = vmatprep.subr.mxu0 0.0
    %351 = vmatpush2.msra.mxu0 0.0
    %352 = vmatprep.subr.mxu0 0.0
    %353 = vmatpush2.msra.mxu0 0.0
    %354 = vmatprep.subr.mxu0 0.0
    %355 = vmatpush2.msra.mxu0 0.0
    %356 = vmatprep.subr.mxu0 0.0
    %357 = vmatpush2.msra.mxu0 0.0
    %358 = vmatprep.subr.mxu0 0.0
    %359 = vmatpush2.msra.mxu0 0.0
    %360 = vmatprep.subr.mxu0 0.0
    %361 = vmatpush2.msra.mxu0 0.0
    %362 = vmatprep.mubr.f32.mxu0 0.0
    %363 = vmatmul.mubr.f32.gmra.mxu0 %v296
    %v364 = vpop.f32.mrf.mxu0
    %v365 = vadd.f32 %v292, %v364
    %v366 = vpop.f32.mrf.mxu0
    %v367 = vadd.f32 %v292, %v366
    %368 = vdwg.mxu0
    %369 = vmatprep.subr.mxu0 0.0
    %370 = vmatpush1.msra.mxu0 0.0
    %371 = vmatprep.subr.mxu0 0.0
    %372 = vmatpush1.msra.mxu0 0.0
    %373 = vmatprep.subr.mxu0 0.0
    %374 = vmatpush1.msra.mxu0 0.0
    %375 = vmatprep.subr.mxu0 0.0
    %376 = vmatpush1.msra.mxu0 0.0
    %377 = vmatprep.subr.mxu0 0.0
    %378 = vmatpush1.msra.mxu0 0.0
    %379 = vmatprep.subr.mxu0 0.0
    %380 = vmatpush1.msra.mxu0 0.0
    %381 = vmatprep.subr.mxu0 0.0
    %382 = vmatpush1.msra.mxu0 0.0
    %383 = vmatprep.subr.mxu0 0.0
    %384 = vmatpush1.msra.mxu0 0.0
    %385 = vmatprep.subr.mxu0 0.0
    %386 = vmatpush1.msra.mxu0 0.0
    %387 = vmatprep.subr.mxu0 0.0
    %388 = vmatpush1.msra.mxu0 0.0
    %389 = vmatprep.subr.mxu0 0.0
    %390 = vmatpush1.msra.mxu0 0.0
    %391 = vmatprep.subr.mxu0 %v285
    %392 = vmatpush1.msra.mxu0 %v284
    %393 = vmatprep.subr.mxu0 %v279
    %394 = vmatpush1.msra.mxu0 %v278
    %395 = vmatprep.subr.mxu0 %v273
    %396 = vmatpush1.msra.mxu0 %v272
    %397 = vmatprep.subr.mxu0 %v267
    %398 = vmatpush1.msra.mxu0 %v266
    %399 = vmatprep.subr.mxu0 %v261
    %400 = vmatpush1.msra.mxu0 %v260
    %401 = vmatprep.subr.mxu0 0.0
    %402 = vmatpush2.msra.mxu0 0.0
    %403 = vmatprep.subr.mxu0 0.0
    %404 = vmatpush2.msra.mxu0 0.0
    %405 = vmatprep.subr.mxu0 0.0
    %406 = vmatpush2.msra.mxu0 0.0
    %407 = vmatprep.subr.mxu0 0.0
    %408 = vmatpush2.msra.mxu0 0.0
    %409 = vmatprep.subr.mxu0 0.0
    %410 = vmatpush2.msra.mxu0 0.0
    %411 = vmatprep.subr.mxu0 0.0
    %412 = vmatpush2.msra.mxu0 0.0
    %413 = vmatprep.subr.mxu0 0.0
    %414 = vmatpush2.msra.mxu0 0.0
    %415 = vmatprep.subr.mxu0 0.0
    %416 = vmatpush2.msra.mxu0 0.0
    %417 = vmatprep.subr.mxu0 0.0
    %418 = vmatpush2.msra.mxu0 0.0
    %419 = vmatprep.subr.mxu0 0.0
    %420 = vmatpush2.msra.mxu0 0.0
    %421 = vmatprep.subr.mxu0 0.0
    %422 = vmatpush2.msra.mxu0 0.0
    %423 = vmatprep.subr.mxu0 0.0
    %424 = vmatpush2.msra.mxu0 0.0
    %425 = vmatprep.subr.mxu0 0.0
    %426 = vmatpush2.msra.mxu0 0.0
    %427 = vmatprep.subr.mxu0 0.0
    %428 = vmatpush2.msra.mxu0 0.0
    %429 = vmatprep.subr.mxu0 0.0
    %430 = vmatpush2.msra.mxu0 0.0
    %431 = vmatprep.subr.mxu0 0.0
    %432 = vmatpush2.msra.mxu0 0.0
    %433 = vmatprep.mubr.f32.mxu0 0.0
    %434 = vmatmul.mubr.f32.gmra.mxu0 %v296
    %v435 = vpop.f32.mrf.mxu0
    %v436 = vadd.f32 %v292, %v435
    %v437 = vpop.f32.mrf.mxu0
    %v438 = vadd.f32 %v292, %v437
    %439 = vdwg.mxu0
    %440 = vmatprep.subr.mxu0 0.0
    %441 = vmatpush1.msra.mxu0 0.0
    %442 = vmatprep.subr.mxu0 0.0
    %443 = vmatpush1.msra.mxu0 0.0
    %444 = vmatprep.subr.mxu0 0.0
    %445 = vmatpush1.msra.mxu0 0.0
    %446 = vmatprep.subr.mxu0 0.0
    %447 = vmatpush1.msra.mxu0 0.0
    %448 = vmatprep.subr.mxu0 0.0
    %449 = vmatpush1.msra.mxu0 0.0
    %450 = vmatprep.subr.mxu0 0.0
    %451 = vmatpush1.msra.mxu0 0.0
    %452 = vmatprep.subr.mxu0 0.0
    %453 = vmatpush1.msra.mxu0 0.0
    %454 = vmatprep.subr.mxu0 0.0
    %455 = vmatpush1.msra.mxu0 0.0
    %456 = vmatprep.subr.mxu0 0.0
    %457 = vmatpush1.msra.mxu0 0.0
    %458 = vmatprep.subr.mxu0 0.0
    %459 = vmatpush1.msra.mxu0 0.0
    %460 = vmatprep.subr.mxu0 0.0
    %461 = vmatpush1.msra.mxu0 0.0
    %462 = vmatprep.subr.mxu0 %v287
    %463 = vmatpush1.msra.mxu0 %v286
    %464 = vmatprep.subr.mxu0 %v281
    %465 = vmatpush1.msra.mxu0 %v280
    %466 = vmatprep.subr.mxu0 %v275
    %467 = vmatpush1.msra.mxu0 %v274
    %468 = vmatprep.subr.mxu0 %v269
    %469 = vmatpush1.msra.mxu0 %v268
    %470 = vmatprep.subr.mxu0 %v263
    %471 = vmatpush1.msra.mxu0 %v262
    %472 = vmatprep.subr.mxu0 0.0
    %473 = vmatpush2.msra.mxu0 0.0
    %474 = vmatprep.subr.mxu0 0.0
    %475 = vmatpush2.msra.mxu0 0.0
    %476 = vmatprep.subr.mxu0 0.0
    %477 = vmatpush2.msra.mxu0 0.0
    %478 = vmatprep.subr.mxu0 0.0
    %479 = vmatpush2.msra.mxu0 0.0
    %480 = vmatprep.subr.mxu0 0.0
    %481 = vmatpush2.msra.mxu0 0.0
    %482 = vmatprep.subr.mxu0 0.0
    %483 = vmatpush2.msra.mxu0 0.0
    %484 = vmatprep.subr.mxu0 0.0
    %485 = vmatpush2.msra.mxu0 0.0
    %486 = vmatprep.subr.mxu0 0.0
    %487 = vmatpush2.msra.mxu0 0.0
    %488 = vmatprep.subr.mxu0 0.0
    %489 = vmatpush2.msra.mxu0 0.0
    %490 = vmatprep.subr.mxu0 0.0
    %491 = vmatpush2.msra.mxu0 0.0
    %492 = vmatprep.subr.mxu0 0.0
    %493 = vmatpush2.msra.mxu0 0.0
    %494 = vmatprep.subr.mxu0 0.0
    %495 = vmatpush2.msra.mxu0 0.0
    %496 = vmatprep.subr.mxu0 0.0
    %497 = vmatpush2.msra.mxu0 0.0
    %498 = vmatprep.subr.mxu0 0.0
    %499 = vmatpush2.msra.mxu0 0.0
    %500 = vmatprep.subr.mxu0 0.0
    %501 = vmatpush2.msra.mxu0 0.0
    %502 = vmatprep.subr.mxu0 0.0
    %503 = vmatpush2.msra.mxu0 0.0
    %504 = vmatprep.mubr.f32.mxu0 0.0
    %505 = vmatmul.mubr.f32.gmra.mxu0 %v296
    %v506 = vpop.f32.mrf.mxu0
    %v507 = vadd.f32 %v292, %v506
    %v508 = vpop.f32.mrf.mxu0
    %v509 = vadd.f32 %v292, %v508
    %510 = vdwg.mxu0
    %v511 = vmax.f32 %v365, 0.0
    %v512 = vmax.f32 %v367, 0.0
    %v513 = vmax.f32 %v436, 0.0
    %v514 = vmax.f32 %v438, 0.0
    %v515 = vmax.f32 %v507, 0.0
    %v516 = vmax.f32 %v509, 0.0
    %v523 = vrot.slane %v511, 4
    %v524 = vrot.slane %v512, 4
    %v525 = vrot.slane %v513, 4
    %v526 = vrot.slane %v514, 4
    %v527 = vrot.slane %v515, 4
    %v528 = vrot.slane %v516, 4
    %v535 = vadd.f32 %v511, %v523
    %v536 = vadd.f32 %v512, %v524
    %v537 = vadd.f32 %v513, %v525
    %v538 = vadd.f32 %v514, %v526
    %v539 = vadd.f32 %v515, %v527
    %v540 = vadd.f32 %v516, %v528
    %v541 = vld [vmem:[%s1] sm:$0xff]
    %v542 = vld [vmem:[%s1 + $0x8] sm:$0xff]
    %v543 = vld [vmem:[%s1 + $0x10] sm:$0xff]
    %v544 = vld [vmem:[%s1 + $0x18] sm:$0xff]
    %v545 = vld [vmem:[%s1 + $0x20] sm:$0xff]
    %v546 = vld [vmem:[%s1 + $0x28] sm:$0xff]
    %v547 = vld [vmem:[%s1 + $0x30] sm:$0xff]
    %v548 = vld [vmem:[%s1 + $0x38] sm:$0xff]
    %v549 = vld [vmem:[%s1 + $0x40] sm:$0xff]
    %v550 = vld [vmem:[%s1 + $0x48] sm:$0xff]
    %v551 = vld [vmem:[%s1 + $0x50] sm:$0xff]
    %v552 = vld [vmem:[%s1 + $0x58] sm:$0xff]
    %v553 = vld [vmem:[%s1 + $0x60] sm:$0xff]
    %v554 = vld [vmem:[%s1 + $0x68] sm:$0xff]
    %v555 = vld [vmem:[%s1 + $0x70] sm:$0xff]
    %v556 = vld [vmem:[%s1 + $0x78] sm:$0xff]
    %v557 = vld [vmem:[%s1 + $0x80] sm:$0xff]
    %v558 = vld [vmem:[%s1 + $0x88] sm:$0xff]
    %v559 = vld [vmem:[%s1 + $0x90] sm:$0xff]
    %v560 = vld [vmem:[%s1 + $0x98] sm:$0xff]
    %v561 = vld [vmem:[%s1 + $0xa0] sm:$0xff]
    %v562 = vld [vmem:[%s1 + $0xa8] sm:$0xff]
    %v563 = vld [vmem:[%s1 + $0xb0] sm:$0xff]
    %v564 = vld [vmem:[%s1 + $0xb8] sm:$0xff]
    %v565 = vld [vmem:[%s1 + $0xc0] sm:$0xff]
    %v566 = vld [vmem:[%s1 + $0xc8] sm:$0xff]
    %v567 = vld [vmem:[%s1 + $0xd0] sm:$0xff]
    %v568 = vld [vmem:[%s1 + $0xd8] sm:$0xff]
    %v569 = vld [vmem:[%s1 + $0xe0] sm:$0xff]
    %v570 = vld [vmem:[%s1 + $0xe8] sm:$0xff]
    %v571 = vld [vmem:[%s1 + $0xf0] sm:$0xff]
    %v572 = vld [vmem:[%s1 + $0xf8] sm:$0xff]
    %v573 = vld [vmem:[%s1 + $0x100] sm:$0xff]
    %v574 = vld [vmem:[%s1 + $0x108] sm:$0xff]
    %v575 = vld [vmem:[%s1 + $0x110] sm:$0xff]
    %v576 = vld [vmem:[%s1 + $0x118] sm:$0xff]
    %v577 = vld [vmem:[%s1 + $0x120] sm:$0xff]
    %v578 = vld [vmem:[%s1 + $0x128] sm:$0xff]
    %v579 = vld [vmem:[%s1 + $0x130] sm:$0xff]
    %v580 = vld [vmem:[%s1 + $0x138] sm:$0xff]
    %v581 = vld [vmem:[%s1 + $0x140] sm:$0xff]
    %v582 = vld [vmem:[%s1 + $0x148] sm:$0xff]
    %v583 = vld [vmem:[%s1 + $0x150] sm:$0xff]
    %v584 = vld [vmem:[%s1 + $0x158] sm:$0xff]
    %v585 = vld [vmem:[%s1 + $0x160] sm:$0xff]
    %v586 = vld [vmem:[%s1 + $0x168] sm:$0xff]
    %v587 = vld [vmem:[%s1 + $0x170] sm:$0xff]
    %v588 = vld [vmem:[%s1 + $0x178] sm:$0xff]
    %v589 = vld [vmem:[%s1 + $0x180] sm:$0xff]
    %v590 = vld [vmem:[%s1 + $0x188] sm:$0xff]
    %v591 = vld [vmem:[%s1 + $0x190] sm:$0xff]
    %v592 = vld [vmem:[%s1 + $0x198] sm:$0xff]
    %v593 = vld [vmem:[%s1 + $0x1a0] sm:$0xff]
    %v594 = vld [vmem:[%s1 + $0x1a8] sm:$0xff]
    %v595 = vld [vmem:[%s1 + $0x1b0] sm:$0xff]
    %v596 = vld [vmem:[%s1 + $0x1b8] sm:$0xff]
    %v597 = vld [vmem:[%s1 + $0x1c0] sm:$0xff]
    %v598 = vld [vmem:[%s1 + $0x1c8] sm:$0xff]
    %v599 = vld [vmem:[%s1 + $0x1d0] sm:$0xff]
    %v600 = vld [vmem:[%s1 + $0x1d8] sm:$0xff]
    %v601 = vld [vmem:[%s1 + $0x1e0] sm:$0xff]
    %v602 = vld [vmem:[%s1 + $0x1e8] sm:$0xff]
    %v603 = vld [vmem:[%s1 + $0x1f0] sm:$0xff]
    %v604 = vld [vmem:[%s1 + $0x1f8] sm:$0xff]
    %v605 = vld [vmem:[%s1 + $0x200] sm:$0xff]
    %v606 = vld [vmem:[%s1 + $0x208] sm:$0xff]
    %v607 = vld [vmem:[%s1 + $0x210] sm:$0xff]
    %v608 = vld [vmem:[%s1 + $0x218] sm:$0xff]
    %v609 = vld [vmem:[%s1 + $0x220] sm:$0xff]
    %v610 = vld [vmem:[%s1 + $0x228] sm:$0xff]
    %v611 = vld [vmem:[%s1 + $0x230] sm:$0xff]
    %v612 = vld [vmem:[%s1 + $0x238] sm:$0xff]
    %v613 = vld [vmem:[%s1 + $0x240] sm:$0xff]
    %v614 = vld [vmem:[%s1 + $0x248] sm:$0xff]
    %v615 = vld [vmem:[%s1 + $0x250] sm:$0xff]
    %v616 = vld [vmem:[%s1 + $0x258] sm:$0xff]
    %v617 = vld [vmem:[%s1 + $0x260] sm:$0xff]
    %v618 = vld [vmem:[%s1 + $0x268] sm:$0xff]
    %v619 = vld [vmem:[%s1 + $0x270] sm:$0xff]
    %v620 = vld [vmem:[%s1 + $0x278] sm:$0xff]
    %v621 = vld [vmem:[%s1 + $0x280] sm:$0xff]
    %v622 = vld [vmem:[%s1 + $0x288] sm:$0xff]
    %v623 = vld [vmem:[%s1 + $0x290] sm:$0xff]
    %v624 = vld [vmem:[%s1 + $0x298] sm:$0xff]
    %v625 = vld [vmem:[%s1 + $0x2a0] sm:$0xff]
    %v626 = vld [vmem:[%s1 + $0x2a8] sm:$0xff]
    %v627 = vld [vmem:[%s1 + $0x2b0] sm:$0xff]
    %v628 = vld [vmem:[%s1 + $0x2b8] sm:$0xff]
    %v629 = vld [vmem:[%s1 + $0x2c0] sm:$0xff]
    %v630 = vld [vmem:[%s1 + $0x2c8] sm:$0xff]
    %v631 = vld [vmem:[%s1 + $0x2d0] sm:$0xff]
    %v632 = vld [vmem:[%s1 + $0x2d8] sm:$0xff]
    %v633 = vld [vmem:[%s1 + $0x2e0] sm:$0xff]
    %v634 = vld [vmem:[%s1 + $0x2e8] sm:$0xff]
    %v635 = vld [vmem:[%s1 + $0x2f0] sm:$0xff]
    %v636 = vld [vmem:[%s1 + $0x2f8] sm:$0xff]
    %637 = vmatprep.subr.mxu0 0.0
    %638 = vmatpush1.msra.mxu0 %v556
    %639 = vmatprep.subr.mxu0 0.0
    %640 = vmatpush1.msra.mxu0 %v555
    %641 = vmatprep.subr.mxu0 0.0
    %642 = vmatpush1.msra.mxu0 %v554
    %643 = vmatprep.subr.mxu0 0.0
    %644 = vmatpush1.msra.mxu0 %v553
    %645 = vmatprep.subr.mxu0 0.0
    %646 = vmatpush1.msra.mxu0 %v552
    %647 = vmatprep.subr.mxu0 0.0
    %648 = vmatpush1.msra.mxu0 %v551
    %649 = vmatprep.subr.mxu0 0.0
    %650 = vmatpush1.msra.mxu0 %v550
    %651 = vmatprep.subr.mxu0 0.0
    %652 = vmatpush1.msra.mxu0 %v549
    %653 = vmatprep.subr.mxu0 0.0
    %654 = vmatpush1.msra.mxu0 %v548
    %655 = vmatprep.subr.mxu0 0.0
    %656 = vmatpush1.msra.mxu0 %v547
    %657 = vmatprep.subr.mxu0 0.0
    %658 = vmatpush1.msra.mxu0 %v546
    %659 = vmatprep.subr.mxu0 0.0
    %660 = vmatpush1.msra.mxu0 %v545
    %661 = vmatprep.subr.mxu0 0.0
    %662 = vmatpush1.msra.mxu0 %v544
    %663 = vmatprep.subr.mxu0 0.0
    %664 = vmatpush1.msra.mxu0 %v543
    %665 = vmatprep.subr.mxu0 0.0
    %666 = vmatpush1.msra.mxu0 %v542
    %667 = vmatprep.subr.mxu0 0.0
    %668 = vmatpush1.msra.mxu0 %v541
    %669 = vmatprep.subr.mxu0 0.0
    %670 = vmatpush2.msra.mxu0 %v572
    %671 = vmatprep.subr.mxu0 0.0
    %672 = vmatpush2.msra.mxu0 %v571
    %673 = vmatprep.subr.mxu0 0.0
    %674 = vmatpush2.msra.mxu0 %v570
    %675 = vmatprep.subr.mxu0 0.0
    %676 = vmatpush2.msra.mxu0 %v569
    %677 = vmatprep.subr.mxu0 0.0
    %678 = vmatpush2.msra.mxu0 %v568
    %679 = vmatprep.subr.mxu0 0.0
    %680 = vmatpush2.msra.mxu0 %v567
    %681 = vmatprep.subr.mxu0 0.0
    %682 = vmatpush2.msra.mxu0 %v566
    %683 = vmatprep.subr.mxu0 0.0
    %684 = vmatpush2.msra.mxu0 %v565
    %685 = vmatprep.subr.mxu0 0.0
    %686 = vmatpush2.msra.mxu0 %v564
    %687 = vmatprep.subr.mxu0 0.0
    %688 = vmatpush2.msra.mxu0 %v563
    %689 = vmatprep.subr.mxu0 0.0
    %690 = vmatpush2.msra.mxu0 %v562
    %691 = vmatprep.subr.mxu0 0.0
    %692 = vmatpush2.msra.mxu0 %v561
    %693 = vmatprep.subr.mxu0 0.0
    %694 = vmatpush2.msra.mxu0 %v560
    %695 = vmatprep.subr.mxu0 0.0
    %696 = vmatpush2.msra.mxu0 %v559
    %697 = vmatprep.subr.mxu0 0.0
    %698 = vmatpush2.msra.mxu0 %v558
    %699 = vmatprep.subr.mxu0 0.0
    %700 = vmatpush2.msra.mxu0 %v557
    %701 = vmatprep.mubr.f32.mxu0 %v536
    %702 = vmatmul.mubr.f32.gmra.mxu0 %v535
    %v703 = vpop.f32.mrf.mxu0
    %v704 = vadd.f32 0.0, %v703
    %v705 = vpop.f32.mrf.mxu0
    %706 = vdwg.mxu0
    %707 = vmatprep.subr.mxu0 0.0
    %708 = vmatpush1.msra.mxu0 %v588
    %709 = vmatprep.subr.mxu0 0.0
    %710 = vmatpush1.msra.mxu0 %v587
    %711 = vmatprep.subr.mxu0 0.0
    %712 = vmatpush1.msra.mxu0 %v586
    %713 = vmatprep.subr.mxu0 0.0
    %714 = vmatpush1.msra.mxu0 %v585
    %715 = vmatprep.subr.mxu0 0.0
    %716 = vmatpush1.msra.mxu0 %v584
    %717 = vmatprep.subr.mxu0 0.0
    %718 = vmatpush1.msra.mxu0 %v583
    %719 = vmatprep.subr.mxu0 0.0
    %720 = vmatpush1.msra.mxu0 %v582
    %721 = vmatprep.subr.mxu0 0.0
    %722 = vmatpush1.msra.mxu0 %v581
    %723 = vmatprep.subr.mxu0 0.0
    %724 = vmatpush1.msra.mxu0 %v580
    %725 = vmatprep.subr.mxu0 0.0
    %726 = vmatpush1.msra.mxu0 %v579
    %727 = vmatprep.subr.mxu0 0.0
    %728 = vmatpush1.msra.mxu0 %v578
    %729 = vmatprep.subr.mxu0 0.0
    %730 = vmatpush1.msra.mxu0 %v577
    %731 = vmatprep.subr.mxu0 0.0
    %732 = vmatpush1.msra.mxu0 %v576
    %733 = vmatprep.subr.mxu0 0.0
    %734 = vmatpush1.msra.mxu0 %v575
    %735 = vmatprep.subr.mxu0 0.0
    %736 = vmatpush1.msra.mxu0 %v574
    %737 = vmatprep.subr.mxu0 0.0
    %738 = vmatpush1.msra.mxu0 %v573
    %739 = vmatprep.subr.mxu0 0.0
    %740 = vmatpush2.msra.mxu0 %v604
    %741 = vmatprep.subr.mxu0 0.0
    %742 = vmatpush2.msra.mxu0 %v603
    %743 = vmatprep.subr.mxu0 0.0
    %744 = vmatpush2.msra.mxu0 %v602
    %745 = vmatprep.subr.mxu0 0.0
    %746 = vmatpush2.msra.mxu0 %v601
    %747 = vmatprep.subr.mxu0 0.0
    %748 = vmatpush2.msra.mxu0 %v600
    %749 = vmatprep.subr.mxu0 0.0
    %750 = vmatpush2.msra.mxu0 %v599
    %751 = vmatprep.subr.mxu0 0.0
    %752 = vmatpush2.msra.mxu0 %v598
    %753 = vmatprep.subr.mxu0 0.0
    %754 = vmatpush2.msra.mxu0 %v597
    %755 = vmatprep.subr.mxu0 0.0
    %756 = vmatpush2.msra.mxu0 %v596
    %757 = vmatprep.subr.mxu0 0.0
    %758 = vmatpush2.msra.mxu0 %v595
    %759 = vmatprep.subr.mxu0 0.0
    %760 = vmatpush2.msra.mxu0 %v594
    %761 = vmatprep.subr.mxu0 0.0
    %762 = vmatpush2.msra.mxu0 %v593
    %763 = vmatprep.subr.mxu0 0.0
    %764 = vmatpush2.msra.mxu0 %v592
    %765 = vmatprep.subr.mxu0 0.0
    %766 = vmatpush2.msra.mxu0 %v591
    %767 = vmatprep.subr.mxu0 0.0
    %768 = vmatpush2.msra.mxu0 %v590
    %769 = vmatprep.subr.mxu0 0.0
    %770 = vmatpush2.msra.mxu0 %v589
    %771 = vmatprep.mubr.f32.mxu0 %v538
    %772 = vmatmul.mubr.f32.gmra.mxu0 %v537
    %v773 = vpop.f32.mrf.mxu0
    %v774 = vadd.f32 %v704, %v773
    %v775 = vpop.f32.mrf.mxu0
    %776 = vdwg.mxu0
    %777 = vmatprep.subr.mxu0 0.0
    %778 = vmatpush1.msra.mxu0 %v620
    %779 = vmatprep.subr.mxu0 0.0
    %780 = vmatpush1.msra.mxu0 %v619
    %781 = vmatprep.subr.mxu0 0.0
    %782 = vmatpush1.msra.mxu0 %v618
    %783 = vmatprep.subr.mxu0 0.0
    %784 = vmatpush1.msra.mxu0 %v617
    %785 = vmatprep.subr.mxu0 0.0
    %786 = vmatpush1.msra.mxu0 %v616
    %787 = vmatprep.subr.mxu0 0.0
    %788 = vmatpush1.msra.mxu0 %v615
    %789 = vmatprep.subr.mxu0 0.0
    %790 = vmatpush1.msra.mxu0 %v614
    %791 = vmatprep.subr.mxu0 0.0
    %792 = vmatpush1.msra.mxu0 %v613
    %793 = vmatprep.subr.mxu0 0.0
    %794 = vmatpush1.msra.mxu0 %v612
    %795 = vmatprep.subr.mxu0 0.0
    %796 = vmatpush1.msra.mxu0 %v611
    %797 = vmatprep.subr.mxu0 0.0
    %798 = vmatpush1.msra.mxu0 %v610
    %799 = vmatprep.subr.mxu0 0.0
    %800 = vmatpush1.msra.mxu0 %v609
    %801 = vmatprep.subr.mxu0 0.0
    %802 = vmatpush1.msra.mxu0 %v608
    %803 = vmatprep.subr.mxu0 0.0
    %804 = vmatpush1.msra.mxu0 %v607
    %805 = vmatprep.subr.mxu0 0.0
    %806 = vmatpush1.msra.mxu0 %v606
    %807 = vmatprep.subr.mxu0 0.0
    %808 = vmatpush1.msra.mxu0 %v605
    %809 = vmatprep.subr.mxu0 0.0
    %810 = vmatpush2.msra.mxu0 %v636
    %811 = vmatprep.subr.mxu0 0.0
    %812 = vmatpush2.msra.mxu0 %v635
    %813 = vmatprep.subr.mxu0 0.0
    %814 = vmatpush2.msra.mxu0 %v634
    %815 = vmatprep.subr.mxu0 0.0
    %816 = vmatpush2.msra.mxu0 %v633
    %817 = vmatprep.subr.mxu0 0.0
    %818 = vmatpush2.msra.mxu0 %v632
    %819 = vmatprep.subr.mxu0 0.0
    %820 = vmatpush2.msra.mxu0 %v631
    %821 = vmatprep.subr.mxu0 0.0
    %822 = vmatpush2.msra.mxu0 %v630
    %823 = vmatprep.subr.mxu0 0.0
    %824 = vmatpush2.msra.mxu0 %v629
    %825 = vmatprep.subr.mxu0 0.0
    %826 = vmatpush2.msra.mxu0 %v628
    %827 = vmatprep.subr.mxu0 0.0
    %828 = vmatpush2.msra.mxu0 %v627
    %829 = vmatprep.subr.mxu0 0.0
    %830 = vmatpush2.msra.mxu0 %v626
    %831 = vmatprep.subr.mxu0 0.0
    %832 = vmatpush2.msra.mxu0 %v625
    %833 = vmatprep.subr.mxu0 0.0
    %834 = vmatpush2.msra.mxu0 %v624
    %835 = vmatprep.subr.mxu0 0.0
    %836 = vmatpush2.msra.mxu0 %v623
    %837 = vmatprep.subr.mxu0 0.0
    %838 = vmatpush2.msra.mxu0 %v622
    %839 = vmatprep.subr.mxu0 0.0
    %840 = vmatpush2.msra.mxu0 %v621
    %841 = vmatprep.mubr.f32.mxu0 %v540
    %842 = vmatmul.mubr.f32.gmra.mxu0 %v539
    %v843 = vpop.f32.mrf.mxu0
    %v844 = vadd.f32 %v774, %v843
    %v845 = vpop.f32.mrf.mxu0
    %846 = vdwg.mxu0
    %v847 = vld [vmem:[%s4] sm:$0xff]
    %v848 = vld [vmem:[%s4 + $0x8] sm:$0xff]
    %v849 = vld [vmem:[%s4 + $0x10] sm:$0xff]
    %v850 = vld [vmem:[%s4 + $0x18] sm:$0xff]
    %v851 = vld [vmem:[%s5] sm:$0xff]
    %v852 = vld [vmem:[%s5 + $0x8] sm:$0xff]
    %v853 = vld [vmem:[%s5 + $0x10] sm:$0xff]
    %v854 = vld [vmem:[%s5 + $0x18] sm:$0xff]
    %856 = vset.pattern.permute.xlu0 0
    %857 = vperm.xlu0 %856, %v851
    %v858 = vpop.permute.xlu0 %857
    %861 = vset.pattern.permute.xlu0 0
    %862 = vperm.xlu0 %861, %v852
    %v863 = vpop.permute.xlu0 %862
    %866 = vset.pattern.permute.xlu0 0
    %867 = vperm.xlu0 %866, %v853
    %v868 = vpop.permute.xlu0 %867
    %871 = vset.pattern.permute.xlu0 0
    %872 = vperm.xlu0 %871, %v854
    %v873 = vpop.permute.xlu0 %872
    %vm875 = vcmask 31744
    %v877 = vsel %vm875, %v847, 0
    %v880 = vsel %vm875, %v848, 0
    %v883 = vsel %vm875, %v849, 0
    %v886 = vsel %vm875, %v850, 0
    %v889 = vsel %vm54, %v844, 0
    %891 = vmatprep.subr.mxu0 0.0
    %892 = vmatpush1.msra.mxu0 0.0
    %893 = vmatprep.subr.mxu0 0.0
    %894 = vmatpush1.msra.mxu0 0.0
    %895 = vmatprep.subr.mxu0 0.0
    %896 = vmatpush1.msra.mxu0 0.0
    %897 = vmatprep.subr.mxu0 0.0
    %898 = vmatpush1.msra.mxu0 0.0
    %899 = vmatprep.subr.mxu0 0.0
    %900 = vmatpush1.msra.mxu0 0.0
    %901 = vmatprep.subr.mxu0 0.0
    %902 = vmatpush1.msra.mxu0 0.0
    %903 = vmatprep.subr.mxu0 0.0
    %904 = vmatpush1.msra.mxu0 0.0
    %905 = vmatprep.subr.mxu0 0.0
    %906 = vmatpush1.msra.mxu0 0.0
    %907 = vmatprep.subr.mxu0 0.0
    %908 = vmatpush1.msra.mxu0 0.0
    %909 = vmatprep.subr.mxu0 0.0
    %910 = vmatpush1.msra.mxu0 0.0
    %911 = vmatprep.subr.mxu0 0.0
    %912 = vmatpush1.msra.mxu0 0.0
    %913 = vmatprep.subr.mxu0 0.0
    %914 = vmatpush1.msra.mxu0 0.0
    %915 = vmatprep.subr.mxu0 0.0
    %916 = vmatpush1.msra.mxu0 0.0
    %917 = vmatprep.subr.mxu0 0.0
    %918 = vmatpush1.msra.mxu0 0.0
    %919 = vmatprep.subr.mxu0 0.0
    %920 = vmatpush1.msra.mxu0 0.0
    %921 = vmatprep.subr.mxu0 0.0
    %922 = vmatpush1.msra.mxu0 %v889
    %923 = vmatprep.subr.mxu0 0.0
    %924 = vmatpush2.msra.mxu0 0.0
    %925 = vmatprep.subr.mxu0 0.0
    %926 = vmatpush2.msra.mxu0 0.0
    %927 = vmatprep.subr.mxu0 0.0
    %928 = vmatpush2.msra.mxu0 0.0
    %929 = vmatprep.subr.mxu0 0.0
    %930 = vmatpush2.msra.mxu0 0.0
    %931 = vmatprep.subr.mxu0 0.0
    %932 = vmatpush2.msra.mxu0 0.0
    %933 = vmatprep.subr.mxu0 0.0
    %934 = vmatpush2.msra.mxu0 0.0
    %935 = vmatprep.subr.mxu0 0.0
    %936 = vmatpush2.msra.mxu0 0.0
    %937 = vmatprep.subr.mxu0 0.0
    %938 = vmatpush2.msra.mxu0 0.0
    %939 = vmatprep.subr.mxu0 0.0
    %940 = vmatpush2.msra.mxu0 0.0
    %941 = vmatprep.subr.mxu0 0.0
    %942 = vmatpush2.msra.mxu0 0.0
    %943 = vmatprep.subr.mxu0 0.0
    %944 = vmatpush2.msra.mxu0 0.0
    %945 = vmatprep.subr.mxu0 0.0
    %946 = vmatpush2.msra.mxu0 0.0
    %947 = vmatprep.subr.mxu0 0.0
    %948 = vmatpush2.msra.mxu0 0.0
    %949 = vmatprep.subr.mxu0 0.0
    %950 = vmatpush2.msra.mxu0 0.0
    %951 = vmatprep.subr.mxu0 0.0
    %952 = vmatpush2.msra.mxu0 0.0
    %953 = vmatprep.subr.mxu0 0.0
    %954 = vmatpush2.msra.mxu0 0.0
    %955 = vmatprep.mubr.f32.mxu0 0.0
    %956 = vmatmul.mubr.f32.gmra.mxu0 %v877
    %v957 = vpop.f32.mrf.mxu0
    %v958 = vadd.f32 %v858, %v957
    %v959 = vpop.f32.mrf.mxu0
    %960 = vmatprep.mubr.f32.mxu0 0.0
    %961 = vmatmul.mubr.f32.gmra.mxu0 %v880
    %v962 = vpop.f32.mrf.mxu0
    %v963 = vadd.f32 %v863, %v962
    %v964 = vpop.f32.mrf.mxu0
    %965 = vmatprep.mubr.f32.mxu0 0.0
    %966 = vmatmul.mubr.f32.gmra.mxu0 %v883
    %v967 = vpop.f32.mrf.mxu0
    %v968 = vadd.f32 %v868, %v967
    %v969 = vpop.f32.mrf.mxu0
    %970 = vmatprep.mubr.f32.mxu0 0.0
    %971 = vmatmul.mubr.f32.gmra.mxu0 %v886
    %v972 = vpop.f32.mrf.mxu0
    %v973 = vadd.f32 %v873, %v972
    %v974 = vpop.f32.mrf.mxu0
    %975 = vdwg.mxu0
    %v976 = vmax.f32 %v958, 0.0
    %v977 = vmax.f32 %v963, 0.0
    %v978 = vmax.f32 %v968, 0.0
    %v979 = vmax.f32 %v973, 0.0
    %v980 = vld [vmem:[%s6] sm:$0xff]
    %v981 = vld [vmem:[%s7] sm:$0xff]
    %983 = vset.pattern.permute.xlu0 0
    %984 = vperm.xlu0 %983, %v981
    %v985 = vpop.permute.xlu0 %984
    %vm987 = vcmask 261120
    %v989 = vsel %vm987, %v980, 0
    %991 = vmatprep.subr.mxu0 0.0
    %992 = vmatpush1.msra.mxu0 0.0
    %993 = vmatprep.subr.mxu0 0.0
    %994 = vmatpush1.msra.mxu0 0.0
    %995 = vmatprep.subr.mxu0 0.0
    %996 = vmatpush1.msra.mxu0 0.0
    %997 = vmatprep.subr.mxu0 0.0
    %998 = vmatpush1.msra.mxu0 0.0
    %999 = vmatprep.subr.mxu0 0.0
    %1000 = vmatpush1.msra.mxu0 0.0
    %1001 = vmatprep.subr.mxu0 0.0
    %1002 = vmatpush1.msra.mxu0 0.0
    %1003 = vmatprep.subr.mxu0 0.0
    %1004 = vmatpush1.msra.mxu0 0.0
    %1005 = vmatprep.subr.mxu0 0.0
    %1006 = vmatpush1.msra.mxu0 0.0
    %1007 = vmatprep.subr.mxu0 0.0
    %1008 = vmatpush1.msra.mxu0 0.0
    %1009 = vmatprep.subr.mxu0 0.0
    %1010 = vmatpush1.msra.mxu0 0.0
    %1011 = vmatprep.subr.mxu0 0.0
    %1012 = vmatpush1.msra.mxu0 0.0
    %1013 = vmatprep.subr.mxu0 0.0
    %1014 = vmatpush1.msra.mxu0 0.0
    %1015 = vmatprep.subr.mxu0 0.0
    %1016 = vmatpush1.msra.mxu0 %v979
    %1017 = vmatprep.subr.mxu0 0.0
    %1018 = vmatpush1.msra.mxu0 %v978
    %1019 = vmatprep.subr.mxu0 0.0
    %1020 = vmatpush1.msra.mxu0 %v977
    %1021 = vmatprep.subr.mxu0 0.0
    %1022 = vmatpush1.msra.mxu0 %v976
    %1023 = vmatprep.subr.mxu0 0.0
    %1024 = vmatpush2.msra.mxu0 0.0
    %1025 = vmatprep.subr.mxu0 0.0
    %1026 = vmatpush2.msra.mxu0 0.0
    %1027 = vmatprep.subr.mxu0 0.0
    %1028 = vmatpush2.msra.mxu0 0.0
    %1029 = vmatprep.subr.mxu0 0.0
    %1030 = vmatpush2.msra.mxu0 0.0
    %1031 = vmatprep.subr.mxu0 0.0
    %1032 = vmatpush2.msra.mxu0 0.0
    %1033 = vmatprep.subr.mxu0 0.0
    %1034 = vmatpush2.msra.mxu0 0.0
    %1035 = vmatprep.subr.mxu0 0.0
    %1036 = vmatpush2.msra.mxu0 0.0
    %1037 = vmatprep.subr.mxu0 0.0
    %1038 = vmatpush2.msra.mxu0 0.0
    %1039 = vmatprep.subr.mxu0 0.0
    %1040 = vmatpush2.msra.mxu0 0.0
    %1041 = vmatprep.subr.mxu0 0.0
    %1042 = vmatpush2.msra.mxu0 0.0
    %1043 = vmatprep.subr.mxu0 0.0
    %1044 = vmatpush2.msra.mxu0 0.0
    %1045 = vmatprep.subr.mxu0 0.0
    %1046 = vmatpush2.msra.mxu0 0.0
    %1047 = vmatprep.subr.mxu0 0.0
    %1048 = vmatpush2.msra.mxu0 0.0
    %1049 = vmatprep.subr.mxu0 0.0
    %1050 = vmatpush2.msra.mxu0 0.0
    %1051 = vmatprep.subr.mxu0 0.0
    %1052 = vmatpush2.msra.mxu0 0.0
    %1053 = vmatprep.subr.mxu0 0.0
    %1054 = vmatpush2.msra.mxu0 0.0
    %1055 = vmatprep.mubr.f32.mxu0 0.0
    %1056 = vmatmul.mubr.f32.gmra.mxu0 %v989
    %v1057 = vpop.f32.mrf.mxu0
    %v1058 = vadd.f32 %v985, %v1057
    %v1059 = vpop.f32.mrf.mxu0
    %1060 = vdwg.mxu0
    %v1062 = vrot.slane %v1058, 4
    %v1064 = vmax.f32 %v1058, %v1062
    %v1065 = vsub.f32 %v1058, %v1064
    %v1066 = vmul.f32 %v1065, 1.442695
    %v1067 = vpow.pop %v1066
    %v1069 = vrot.slane %v1064, 4
    %v1071 = vsub.f32 %v1058, %v1069
    %v1072 = vmul.f32 %v1071, 1.442695
    %v1073 = vpow.pop %v1072
    %v1075 = vrot.slane %v1073, 4
    %v1077 = vadd.f32 %v1067, %v1075
    %v1078 = vrcp.pop %v1077
    %v1079 = vmul.f32 %v1067, %v1078
    %v1081 = vrot.slane %v1078, 4
    %v1083 = vmul.f32 %v1073, %v1081
    %1085 = vset.pattern.permute.xlu0 0
    %1086 = vperm.xlu0 %1085, %v1079
    %v1087 = vpop.permute.xlu0 %1086
    %v1089 = vmul.f32 %v1087, %v511
    %v1090 = vmul.f32 %v1087, %v512
    %v1091 = vmul.f32 %v1087, %v513
    %1093 = vset.pattern.permute.xlu0 0
    %1094 = vperm.xlu0 %1093, %v1083
    %v1095 = vpop.permute.xlu0 %1094
    %v1097 = vmul.f32 %v1095, %v511
    %v1098 = vmul.f32 %v1095, %v512
    %v1099 = vmul.f32 %v1095, %v513
    %v1103 = vrot.slane %v1097, 4
    %v1104 = vrot.slane %v1098, 4
    %v1105 = vrot.slane %v1099, 4
    %v1109 = vadd.f32 %v1089, %v1103
    %v1110 = vadd.f32 %v1090, %v1104
    %v1111 = vadd.f32 %v1091, %v1105
    %1112 = vset.pattern.permute.xlu0 1
    %1113 = vperm.xlu0 %1112, %v1079
    %v1114 = vpop.permute.xlu0 %1113
    %v1116 = vmul.f32 %v1114, %v514
    %v1117 = vmul.f32 %v1114, %v515
    %v1118 = vmul.f32 %v1114, %v516
    %1119 = vset.pattern.permute.xlu0 1
    %1120 = vperm.xlu0 %1119, %v1083
    %v1121 = vpop.permute.xlu0 %1120
    %v1123 = vmul.f32 %v1121, %v514
    %v1124 = vmul.f32 %v1121, %v515
    %v1125 = vmul.f32 %v1121, %v516
    %v1129 = vrot.slane %v1123, 4
    %v1130 = vrot.slane %v1124, 4
    %v1131 = vrot.slane %v1125, 4
    %v1135 = vadd.f32 %v1116, %v1129
    %v1136 = vadd.f32 %v1117, %v1130
    %v1137 = vadd.f32 %v1118, %v1131
    %v1141 = vrot.slane %v1135, 4
    %v1142 = vrot.slane %v1136, 4
    %v1143 = vrot.slane %v1137, 4
    %v1147 = vsel %vm54, %v1109, %v1141
    %v1148 = vsel %vm54, %v1110, %v1142
    %v1149 = vsel %vm54, %v1111, %v1143
    %1150 = vst [vmem:[#allocation3] sm:$0xff] %v1147
    %1151 = vst [vmem:[#allocation3 + $0x8] sm:$0xff] %v1148
    %1152 = vst [vmem:[#allocation3 + $0x10] sm:$0xff] %v1149
    // Predicated region
    $region34: #{tpu_custom_call.1} parent=1 // pred_check
      _
    $region35: #{tpu_custom_call.1} parent=1 // pred_check_branch
      %1154 = sbr.rel (0) target = $region37
    $region36: #{tpu_custom_call.1} parent=1 // pred_region
      %s1156 = ssub.s32 384, 384
      %1157 = vsyncadd [#allocation4], %s1156
      %s1159 = sshll.u32 [#allocation3], 4
      %s1160 = int_to_ptr.vmem [resolvable:$true] %s1159
      %1162 = dma.vmem_to_hbm [thread:$0]  %s1160, 384, %s8, [#allocation4]
    $region37: #{tpu_custom_call.1} parent=1 // pred_fallthru
      _
    // Predicated region
    $region38: #{tpu_custom_call.1} parent=1 // pred_check
      _
    $region39: #{tpu_custom_call.1} parent=1 // pred_check_branch
      %1164 = sbr.rel (0) target = $region41
    $region40: #{tpu_custom_call.1} parent=1 // pred_region
      %1165 = dma.done [#allocation4], 384
    $region41: #{tpu_custom_call.1} parent=1 // pred_fallthru
      _
    %1166 = vsyncpa [#allocation4], 1

</llo_original>
